<compile_context>
chip_gen: v6e
topology: v6e:2x2x1
jax: 0.10.0
libtpu: 0.0.40
codegen_flags: <defaults>
</compile_context>

<pallas_src>
import numpy as np

import jax
import jax.numpy as jnp
from jax import lax
from jax.experimental import pallas as pl
from jax.experimental.pallas import tpu as pltpu


_CHUNK = 128   # per-kh lane chunk width of the row-slab LHS (lane padded)
_NBLK = 128    # per-pooling-phase column block of the banded conv weights
_ROWS = 32     # physical rows carried per image through the whole kernel


def _round_up(x, m):
    return (x + m - 1) // m * m


# ---------------------------------------------------------------------------
# Wrapper-side weight repacking (built once per call, tiny)
# ---------------------------------------------------------------------------
def _banded_conv_weight(w, *, lane_of_in, w_in, pw_out, dtype):
    """Banded (5*_CHUNK, 2*_NBLK) matrix folding the kw window + W-pool phase.

    For a row-form activation A with A[h, lane_of_in(c, wi)] = act[h, wi, c]
    and LHS rows L[h] = concat_kh A[h + kh*row_stride], the product L @ M gives
        (L @ M)[h, bb*_NBLK + pw*Cout + co]
            = sum_{kh,kw,c} act[h+kh, 2*pw + bb + kw, c] * w[co, c, kh, kw]
    i.e. the conv output at (row h, column 2*pw+bb, channel co).  All other
    entries of M are exactly zero (lane / phase padding).
    """
    Cout, Cin, K, _ = w.shape
    nflat = Cout * Cin * K * K
    gather = np.full((K * _CHUNK, 2 * _NBLK), nflat, dtype=np.int32)
    widx = np.arange(nflat).reshape(Cout, Cin, K, K)
    for kh in range(K):
        for kw in range(K):
            for bb in range(2):
                for pw in range(pw_out):
                    wi = 2 * pw + bb + kw
                    if wi >= w_in:
                        continue
                    rows = np.array(
                        [kh * _CHUNK + lane_of_in(c, wi) for c in range(Cin)])
                    cols = bb * _NBLK + pw * Cout + np.arange(Cout)
                    gather[np.ix_(rows, cols)] = widx[:, :, kh, kw].T
    wflat = jnp.concatenate([w.reshape(-1), jnp.zeros((1,), w.dtype)])
    return wflat[jnp.asarray(gather)].astype(dtype)


def _pool_bias_row(b, pw_out):
    """Conv bias broadcast over the pooled-W positions, lane padded to 128."""
    row = jnp.tile(b.astype(jnp.float32), pw_out)
    return jnp.pad(row, (0, _NBLK - row.shape[0])).reshape(1, _NBLK)


def _pack_fc1(w, dtype):
    """fc1 (l1, 400) -> (5*128, l1p): rows match the kernel's `feat` layout
    (ph2-major 128-lane blocks, lane = pw2*16 + co2), absorbing PyTorch's
    NCHW flatten (co2, ph2, pw2) on the weight side."""
    l1 = w.shape[0]
    wk = w.reshape(l1, 16, 5, 5).transpose(2, 3, 1, 0)       # (ph2, pw2, co2, l1)
    wk = wk.reshape(5, 80, l1)
    wk = jnp.pad(wk, ((0, 0), (0, _NBLK - 80), (0, 0))).reshape(5 * _NBLK, l1)
    return jnp.pad(wk, ((0, 0), (0, _round_up(l1, 128) - l1))).astype(dtype)


def _pack_fc(w, dtype, n_pad=None):
    """PyTorch Linear weight (out, in) -> (in_padded, out_padded)."""
    n_out, n_in = w.shape
    n_pad = _round_up(n_out, 128) if n_pad is None else n_pad
    wk = jnp.pad(w.T, ((0, _round_up(n_in, 128) - n_in), (0, n_pad - n_out)))
    return wk.astype(dtype)


def _pad_bias(b, n):
    return jnp.pad(b.astype(jnp.float32), (0, n - b.shape[0])).reshape(1, n)


def _batch_tile(B):
    if B <= 8:
        return B
    # >= 2 grid steps (v7x megacore), multiple of 8 sublanes, VMEM-capped tile.
    return min(64, _round_up(pl.cdiv(B, 2), 8))


def _vmem_limit_bytes():
    try:
        cap = pltpu.get_tpu_info().vmem_capacity_bytes
    except Exception:  # pragma: no cover - conservative fallback
        cap = 64 * 1024 * 1024
    return max(32 * 1024 * 1024, min(int(cap) * 3 // 4, 96 * 1024 * 1024))


# ---------------------------------------------------------------------------
# The fused kernel
# ---------------------------------------------------------------------------
def _net_kernel(x_ref, w1_ref, b1_ref, w2_ref, b2_ref,
                wf1_ref, bf1_ref, wf2_ref, bf2_ref, wf3_ref, bf3_ref, o_ref):
    tb = x_ref.shape[0]
    cd = w1_ref.dtype                              # bf16 compute dtype

    def row_shift(a, k):
        # per-image shift "up" by k rows along axis 1 (wraps; wrapped rows
        # are never consumed by valid outputs).
        if k == 0:
            return a
        return jnp.concatenate([a[:, k:, :], a[:, :k, :]], axis=1)

    def row_slab(a, stride):
        # in-VMEM "im2col" over kh: concat of 5 row-shifted copies.
        parts = [row_shift(a, stride * k) for k in range(5)]
        return jnp.concatenate(parts, axis=-1).reshape(tb * _ROWS, 5 * _CHUNK)

    def conv_pool_relu(a, w_ref, b_ref, stride, pool_shift):
        # one matmul per conv layer, batch folded into M = tb*32 rows.
        y = jnp.dot(row_slab(a, stride), w_ref[...],
                    preferred_element_type=jnp.float32)
        y = y.reshape(tb, _ROWS, 2 * _NBLK)
        z = jnp.maximum(y[..., :_NBLK], y[..., _NBLK:])        # W-direction pool
        z = jnp.maximum(z, row_shift(z, pool_shift))           # H-direction pool
        return jnp.maximum(z + b_ref[...], 0.0).astype(cd)     # bias + relu

    # raw NCHW f32 -> per-image row form (tb, 32, 128); lane = c*32 + w.
    x = x_ref[...]
    xr = jnp.concatenate(
        [x[:, 0].astype(cd), x[:, 1].astype(cd), x[:, 2].astype(cd),
         jnp.zeros((tb, _ROWS, _CHUNK - 96), cd)], axis=-1)

    # conv1: valid pooled rows at 2*ph1 (ph1 < 14), lanes pw1*6 + c (< 84).
    p1 = conv_pool_relu(xr, w1_ref, b1_ref, stride=1, pool_shift=1)
    # conv2: valid pooled rows at 4*ph2 (ph2 < 5), lanes pw2*16 + co (< 80).
    p2 = conv_pool_relu(p1, w2_ref, b2_ref, stride=2, pool_shift=2)

    # flatten: ph2-major 128-lane blocks -> (tb, 640); matches _pack_fc1 rows.
    feat = jnp.concatenate([p2[:, 4 * p, :] for p in range(5)], axis=-1)

    # fc1 -> relu -> fc2 -> relu -> fc3, all in VMEM/vregs.
    h = jnp.dot(feat, wf1_ref[...], preferred_element_type=jnp.float32)
    h = jnp.maximum(h + bf1_ref[...], 0.0).astype(cd)
    h = jnp.dot(h, wf2_ref[...], preferred_element_type=jnp.float32)
    h = jnp.maximum(h + bf2_ref[...], 0.0).astype(cd)
    h = jnp.dot(h, wf3_ref[...], preferred_element_type=jnp.float32)
    o_ref[...] = (h + bf3_ref[...]).astype(o_ref.dtype)


# ---------------------------------------------------------------------------
# Forward pass (Pallas)
# ---------------------------------------------------------------------------
def net_forward(params, x, *, compute_dtype=jnp.bfloat16):
    """x: (B, 3, 32, 32) NCHW float32 (PyTorch layout) -> (B, 10) logits."""
    B = x.shape[0]
    assert x.shape[1:] == (3, 32, 32), x.shape
    cd = compute_dtype
    l1 = params["fc1_w"].shape[0]
    l2 = params["fc2_w"].shape[0]
    l1p, l2p, nop = _round_up(l1, 128), _round_up(l2, 128), 128

    w1 = _banded_conv_weight(params["conv1_w"],
                             lane_of_in=lambda c, wi: c * 32 + wi,
                             w_in=32, pw_out=14, dtype=cd)
    b1 = _pool_bias_row(params["conv1_b"], 14)
    w2 = _banded_conv_weight(params["conv2_w"],
                             lane_of_in=lambda c, wi: wi * 6 + c,
                             w_in=14, pw_out=5, dtype=cd)
    b2 = _pool_bias_row(params["conv2_b"], 5)
    wf1 = _pack_fc1(params["fc1_w"], cd)
    bf1 = _pad_bias(params["fc1_b"], l1p)
    wf2 = _pack_fc(params["fc2_w"], cd)                       # (l1p, l2p)
    bf2 = _pad_bias(params["fc2_b"], l2p)
    wf3 = _pack_fc(params["fc3_w"], cd, n_pad=nop)            # (l2p, 128)
    bf3 = _pad_bias(params["fc3_b"], nop)

    tb = _batch_tile(B)
    grid = (pl.cdiv(B, tb),)
    kc = 5 * _CHUNK

    cost = pl.CostEstimate(
        flops=2 * B * _ROWS * kc * 2 * _NBLK * 2
              + 2 * B * (kc * l1p + l1p * l2p + l2p * nop),
        transcendentals=0,
        bytes_accessed=B * 3 * 32 * 32 * 4 + B * nop * 4
                       + 2 * (w1.size + w2.size + wf1.size + wf2.size
                              + wf3.size))

    const2 = lambda i: (0, 0)
    out = pl.pallas_call(
        _net_kernel,
        out_shape=jax.ShapeDtypeStruct((B, nop), jnp.float32),
        grid=grid,
        in_specs=[
            pl.BlockSpec((tb, 3, 32, 32), lambda i: (i, 0, 0, 0)),
            pl.BlockSpec(w1.shape, const2), pl.BlockSpec(b1.shape, const2),
            pl.BlockSpec(w2.shape, const2), pl.BlockSpec(b2.shape, const2),
            pl.BlockSpec(wf1.shape, const2), pl.BlockSpec(bf1.shape, const2),
            pl.BlockSpec(wf2.shape, const2), pl.BlockSpec(bf2.shape, const2),
            pl.BlockSpec(wf3.shape, const2), pl.BlockSpec(bf3.shape, const2),
        ],
        out_specs=pl.BlockSpec((tb, nop), lambda i: (i, 0)),
        compiler_params=pltpu.CompilerParams(
            dimension_semantics=("parallel",),
            vmem_limit_bytes=_vmem_limit_bytes()),
        cost_estimate=cost,
    )(x, w1, b1, w2, b2, wf1, bf1, wf2, bf2, wf3, bf3)
    return out[:, :10]


# ---------------------------------------------------------------------------
# Parameter init (deterministic, PyTorch-like uniform bounds)
# ---------------------------------------------------------------------------
def init_params(key, l1=120, l2=84):
    def u(key, shape, fan_in):
        bound = 1.0 / jnp.sqrt(fan_in)
        return jax.random.uniform(key, shape, jnp.float32, -bound, bound)

    ks = jax.random.split(key, 10)
    return {
        "conv1_w": u(ks[0], (6, 3, 5, 5), 3 * 5 * 5),
        "conv1_b": u(ks[1], (6,), 3 * 5 * 5),
        "conv2_w": u(ks[2], (16, 6, 5, 5), 6 * 5 * 5),
        "conv2_b": u(ks[3], (16,), 6 * 5 * 5),
        "fc1_w": u(ks[4], (l1, 16 * 5 * 5), 16 * 5 * 5),
        "fc1_b": u(ks[5], (l1,), 16 * 5 * 5),
        "fc2_w": u(ks[6], (l2, l1), l1),
        "fc2_b": u(ks[7], (l2,), l1),
        "fc3_w": u(ks[8], (10, l2), l2),
        "fc3_b": u(ks[9], (10,), l2),
    }


# ---------------------------------------------------------------------------
# Pure-JAX reference with the SAME precision policy (bf16 matmul operands,
# fp32 accumulation / epilogue) so the correctness check isolates kernel logic.
# ---------------------------------------------------------------------------
def net_forward_ref(params, x, *, compute_dtype=jnp.bfloat16):
    cd = compute_dtype

    def conv(x, w, b):
        y = lax.conv_general_dilated(
            x.astype(cd), w.astype(cd), window_strides=(1, 1), padding="VALID",
            dimension_numbers=("NCHW", "OIHW", "NCHW"),
            preferred_element_type=jnp.float32)
        return jax.nn.relu(y + b[None, :, None, None])

    def pool(x):
        return lax.reduce_window(x, -jnp.inf, lax.max,
                                 (1, 1, 2, 2), (1, 1, 2, 2), "VALID")

    def dense(x, w, b):
        return jnp.dot(x.astype(cd), w.T.astype(cd),
                       preferred_element_type=jnp.float32) + b

    x = pool(conv(x, params["conv1_w"], params["conv1_b"]))
    x = pool(conv(x, params["conv2_w"], params["conv2_b"]))
    x = x.reshape(x.shape[0], -1)                            # NCHW flatten
    x = jax.nn.relu(dense(x, params["fc1_w"], params["fc1_b"]))
    x = jax.nn.relu(dense(x, params["fc2_w"], params["fc2_b"]))
    return dense(x, params["fc3_w"], params["fc3_b"])


if __name__ == "__main__":
    key = jax.random.PRNGKey(0)
    pkey, xkey = jax.random.split(key)
    params = init_params(pkey)

    # CIFAR-shaped input: 32x32 is required so the flatten hits 16*5*5 = 400.
    x = jax.random.normal(xkey, (2, 3, 32, 32), dtype=jnp.float32)

    out = jax.block_until_ready(jax.jit(net_forward)(params, x))
    assert out.shape == (2, 10), out.shape

    ref = jax.block_until_ready(jax.jit(net_forward_ref)(params, x))
    # Tolerance covers bf16 ulp / accumulation-order effects; any real layout
    # or indexing bug would produce O(0.1 - 1) errors.
    assert jnp.allclose(out, ref, rtol=1e-2, atol=1e-2), \
        float(jnp.max(jnp.abs(out - ref)))

    print("KERNEL_OK")
</pallas_src>

<mosaic_0001>
module attributes {stable_mosaic.version = 11 : i64} {
  func.func @_net_kernel(%arg0: i32, %arg1: memref<2x3x32x32xf32, #tpu.memory_space<vmem>>, %arg2: memref<640x256xbf16, #tpu.memory_space<vmem>>, %arg3: memref<1x128xf32, #tpu.memory_space<vmem>>, %arg4: memref<640x256xbf16, #tpu.memory_space<vmem>>, %arg5: memref<1x128xf32, #tpu.memory_space<vmem>>, %arg6: memref<640x128xbf16, #tpu.memory_space<vmem>>, %arg7: memref<1x128xf32, #tpu.memory_space<vmem>>, %arg8: memref<128x128xbf16, #tpu.memory_space<vmem>>, %arg9: memref<1x128xf32, #tpu.memory_space<vmem>>, %arg10: memref<128x128xbf16, #tpu.memory_space<vmem>>, %arg11: memref<1x128xf32, #tpu.memory_space<vmem>>, %arg12: memref<2x128xf32, #tpu.memory_space<vmem>>) attributes {dimension_semantics = [#tpu.dimension_semantics<parallel>], iteration_bounds = array<i64: 1>, scalar_prefetch = 0 : i64, scratch_operands = 0 : i64, tpu.core_type = #tpu.core_type<tc>, window_params = [{transform_indices = @transform_0, window_bounds = array<i64: 2, 3, 32, 32>}, {pipeline_mode = #tpu.pipeline_mode<synchronous>, transform_indices = @transform_1, window_bounds = array<i64: 640, 256>}, {pipeline_mode = #tpu.pipeline_mode<synchronous>, transform_indices = @transform_2, window_bounds = array<i64: 1, 128>}, {pipeline_mode = #tpu.pipeline_mode<synchronous>, transform_indices = @transform_3, window_bounds = array<i64: 640, 256>}, {pipeline_mode = #tpu.pipeline_mode<synchronous>, transform_indices = @transform_4, window_bounds = array<i64: 1, 128>}, {pipeline_mode = #tpu.pipeline_mode<synchronous>, transform_indices = @transform_5, window_bounds = array<i64: 640, 128>}, {pipeline_mode = #tpu.pipeline_mode<synchronous>, transform_indices = @transform_6, window_bounds = array<i64: 1, 128>}, {pipeline_mode = #tpu.pipeline_mode<synchronous>, transform_indices = @transform_7, window_bounds = array<i64: 128, 128>}, {pipeline_mode = #tpu.pipeline_mode<synchronous>, transform_indices = @transform_8, window_bounds = array<i64: 1, 128>}, {pipeline_mode = #tpu.pipeline_mode<synchronous>, transform_indices = @transform_9, window_bounds = array<i64: 128, 128>}, {pipeline_mode = #tpu.pipeline_mode<synchronous>, transform_indices = @transform_10, window_bounds = array<i64: 1, 128>}, {transform_indices = @transform_11, window_bounds = array<i64: 2, 128>}]} {
    %c0 = arith.constant 0 : index
    %c0_0 = arith.constant 0 : index
    %c0_1 = arith.constant 0 : index
    %c0_2 = arith.constant 0 : index
    %0 = vector.load %arg1[%c0, %c0_0, %c0_1, %c0_2] : memref<2x3x32x32xf32, #tpu.memory_space<vmem>>, vector<2x3x32x32xf32>
    %1 = vector.extract_strided_slice %0 {offsets = [0, 0, 0, 0], sizes = [2, 1, 32, 32], strides = [1, 1, 1, 1]} : vector<2x3x32x32xf32> to vector<2x1x32x32xf32>
    %2 = vector.shape_cast %1 : vector<2x1x32x32xf32> to vector<2x32x32xf32>
    %3 = arith.truncf %2 : vector<2x32x32xf32> to vector<2x32x32xbf16>
    %4 = vector.extract_strided_slice %0 {offsets = [0, 1, 0, 0], sizes = [2, 1, 32, 32], strides = [1, 1, 1, 1]} : vector<2x3x32x32xf32> to vector<2x1x32x32xf32>
    %5 = vector.shape_cast %4 : vector<2x1x32x32xf32> to vector<2x32x32xf32>
    %6 = arith.truncf %5 : vector<2x32x32xf32> to vector<2x32x32xbf16>
    %7 = vector.extract_strided_slice %0 {offsets = [0, 2, 0, 0], sizes = [2, 1, 32, 32], strides = [1, 1, 1, 1]} : vector<2x3x32x32xf32> to vector<2x1x32x32xf32>
    %8 = vector.shape_cast %7 : vector<2x1x32x32xf32> to vector<2x32x32xf32>
    %9 = arith.truncf %8 : vector<2x32x32xf32> to vector<2x32x32xbf16>
    %cst = arith.constant 0.000000e+00 : bf16
    %10 = vector.broadcast %cst : bf16 to vector<2x32x32xbf16>
    %11 = tpu.concatenate %3, %6, %9, %10 in 2 : vector<2x32x32xbf16>, vector<2x32x32xbf16>, vector<2x32x32xbf16>, vector<2x32x32xbf16> -> vector<2x32x128xbf16>
    %12 = vector.extract_strided_slice %11 {offsets = [0, 1, 0], sizes = [2, 31, 128], strides = [1, 1, 1]} : vector<2x32x128xbf16> to vector<2x31x128xbf16>
    %13 = vector.extract_strided_slice %11 {offsets = [0, 0, 0], sizes = [2, 1, 128], strides = [1, 1, 1]} : vector<2x32x128xbf16> to vector<2x1x128xbf16>
    %14 = tpu.concatenate %12, %13 in 1 : vector<2x31x128xbf16>, vector<2x1x128xbf16> -> vector<2x32x128xbf16>
    %15 = vector.extract_strided_slice %11 {offsets = [0, 2, 0], sizes = [2, 30, 128], strides = [1, 1, 1]} : vector<2x32x128xbf16> to vector<2x30x128xbf16>
    %16 = vector.extract_strided_slice %11 {offsets = [0, 0, 0], sizes = [2, 2, 128], strides = [1, 1, 1]} : vector<2x32x128xbf16> to vector<2x2x128xbf16>
    %17 = tpu.concatenate %15, %16 in 1 : vector<2x30x128xbf16>, vector<2x2x128xbf16> -> vector<2x32x128xbf16>
    %18 = vector.extract_strided_slice %11 {offsets = [0, 3, 0], sizes = [2, 29, 128], strides = [1, 1, 1]} : vector<2x32x128xbf16> to vector<2x29x128xbf16>
    %19 = vector.extract_strided_slice %11 {offsets = [0, 0, 0], sizes = [2, 3, 128], strides = [1, 1, 1]} : vector<2x32x128xbf16> to vector<2x3x128xbf16>
    %20 = tpu.concatenate %18, %19 in 1 : vector<2x29x128xbf16>, vector<2x3x128xbf16> -> vector<2x32x128xbf16>
    %21 = vector.extract_strided_slice %11 {offsets = [0, 4, 0], sizes = [2, 28, 128], strides = [1, 1, 1]} : vector<2x32x128xbf16> to vector<2x28x128xbf16>
    %22 = vector.extract_strided_slice %11 {offsets = [0, 0, 0], sizes = [2, 4, 128], strides = [1, 1, 1]} : vector<2x32x128xbf16> to vector<2x4x128xbf16>
    %23 = tpu.concatenate %21, %22 in 1 : vector<2x28x128xbf16>, vector<2x4x128xbf16> -> vector<2x32x128xbf16>
    %24 = tpu.concatenate %11, %14, %17, %20, %23 in 2 : vector<2x32x128xbf16>, vector<2x32x128xbf16>, vector<2x32x128xbf16>, vector<2x32x128xbf16>, vector<2x32x128xbf16> -> vector<2x32x640xbf16>
    %25 = vector.shape_cast %24 : vector<2x32x640xbf16> to vector<64x640xbf16>
    %c0_3 = arith.constant 0 : index
    %c0_4 = arith.constant 0 : index
    %26 = vector.load %arg2[%c0_3, %c0_4] : memref<640x256xbf16, #tpu.memory_space<vmem>>, vector<640x256xbf16>
    %cst_5 = arith.constant dense<0.000000e+00> : vector<64x256xf32>
    %27 = tpu.matmul %25, %26, %cst_5 {dimension_numbers = #tpu.dot_dimension_numbers<[1], [0], [0], [1], [0, 0, 1, 1], [], []>} : vector<64x640xbf16>, vector<640x256xbf16>, vector<64x256xf32> -> vector<64x256xf32>
    %28 = vector.shape_cast %27 : vector<64x256xf32> to vector<2x32x256xf32>
    %29 = vector.extract_strided_slice %28 {offsets = [0, 0, 0], sizes = [2, 32, 128], strides = [1, 1, 1]} : vector<2x32x256xf32> to vector<2x32x128xf32>
    %30 = vector.extract_strided_slice %28 {offsets = [0, 0, 128], sizes = [2, 32, 128], strides = [1, 1, 1]} : vector<2x32x256xf32> to vector<2x32x128xf32>
    %31 = arith.maximumf %29, %30 : vector<2x32x128xf32>
    %32 = vector.extract_strided_slice %31 {offsets = [0, 1, 0], sizes = [2, 31, 128], strides = [1, 1, 1]} : vector<2x32x128xf32> to vector<2x31x128xf32>
    %33 = vector.extract_strided_slice %31 {offsets = [0, 0, 0], sizes = [2, 1, 128], strides = [1, 1, 1]} : vector<2x32x128xf32> to vector<2x1x128xf32>
    %34 = tpu.concatenate %32, %33 in 1 : vector<2x31x128xf32>, vector<2x1x128xf32> -> vector<2x32x128xf32>
    %35 = arith.maximumf %31, %34 : vector<2x32x128xf32>
    %c0_6 = arith.constant 0 : index
    %c0_7 = arith.constant 0 : index
    %36 = vector.load %arg3[%c0_6, %c0_7] : memref<1x128xf32, #tpu.memory_space<vmem>>, vector<1x128xf32>
    %37 = vector.shape_cast %36 : vector<1x128xf32> to vector<1x1x128xf32>
    %38 = vector.broadcast %37 : vector<1x1x128xf32> to vector<2x32x128xf32>
    %39 = arith.addf %35, %38 : vector<2x32x128xf32>
    %cst_8 = arith.constant 0.000000e+00 : f32
    %40 = vector.broadcast %cst_8 : f32 to vector<2x32x128xf32>
    %41 = arith.maximumf %39, %40 : vector<2x32x128xf32>
    %42 = arith.truncf %41 : vector<2x32x128xf32> to vector<2x32x128xbf16>
    %43 = vector.extract_strided_slice %42 {offsets = [0, 2, 0], sizes = [2, 30, 128], strides = [1, 1, 1]} : vector<2x32x128xbf16> to vector<2x30x128xbf16>
    %44 = vector.extract_strided_slice %42 {offsets = [0, 0, 0], sizes = [2, 2, 128], strides = [1, 1, 1]} : vector<2x32x128xbf16> to vector<2x2x128xbf16>
    %45 = tpu.concatenate %43, %44 in 1 : vector<2x30x128xbf16>, vector<2x2x128xbf16> -> vector<2x32x128xbf16>
    %46 = vector.extract_strided_slice %42 {offsets = [0, 4, 0], sizes = [2, 28, 128], strides = [1, 1, 1]} : vector<2x32x128xbf16> to vector<2x28x128xbf16>
    %47 = vector.extract_strided_slice %42 {offsets = [0, 0, 0], sizes = [2, 4, 128], strides = [1, 1, 1]} : vector<2x32x128xbf16> to vector<2x4x128xbf16>
    %48 = tpu.concatenate %46, %47 in 1 : vector<2x28x128xbf16>, vector<2x4x128xbf16> -> vector<2x32x128xbf16>
    %49 = vector.extract_strided_slice %42 {offsets = [0, 6, 0], sizes = [2, 26, 128], strides = [1, 1, 1]} : vector<2x32x128xbf16> to vector<2x26x128xbf16>
    %50 = vector.extract_strided_slice %42 {offsets = [0, 0, 0], sizes = [2, 6, 128], strides = [1, 1, 1]} : vector<2x32x128xbf16> to vector<2x6x128xbf16>
    %51 = tpu.concatenate %49, %50 in 1 : vector<2x26x128xbf16>, vector<2x6x128xbf16> -> vector<2x32x128xbf16>
    %52 = vector.extract_strided_slice %42 {offsets = [0, 8, 0], sizes = [2, 24, 128], strides = [1, 1, 1]} : vector<2x32x128xbf16> to vector<2x24x128xbf16>
    %53 = vector.extract_strided_slice %42 {offsets = [0, 0, 0], sizes = [2, 8, 128], strides = [1, 1, 1]} : vector<2x32x128xbf16> to vector<2x8x128xbf16>
    %54 = tpu.concatenate %52, %53 in 1 : vector<2x24x128xbf16>, vector<2x8x128xbf16> -> vector<2x32x128xbf16>
    %55 = tpu.concatenate %42, %45, %48, %51, %54 in 2 : vector<2x32x128xbf16>, vector<2x32x128xbf16>, vector<2x32x128xbf16>, vector<2x32x128xbf16>, vector<2x32x128xbf16> -> vector<2x32x640xbf16>
    %56 = vector.shape_cast %55 : vector<2x32x640xbf16> to vector<64x640xbf16>
    %c0_9 = arith.constant 0 : index
    %c0_10 = arith.constant 0 : index
    %57 = vector.load %arg4[%c0_9, %c0_10] : memref<640x256xbf16, #tpu.memory_space<vmem>>, vector<640x256xbf16>
    %cst_11 = arith.constant dense<0.000000e+00> : vector<64x256xf32>
    %58 = tpu.matmul %56, %57, %cst_11 {dimension_numbers = #tpu.dot_dimension_numbers<[1], [0], [0], [1], [0, 0, 1, 1], [], []>} : vector<64x640xbf16>, vector<640x256xbf16>, vector<64x256xf32> -> vector<64x256xf32>
    %59 = vector.shape_cast %58 : vector<64x256xf32> to vector<2x32x256xf32>
    %60 = vector.extract_strided_slice %59 {offsets = [0, 0, 0], sizes = [2, 32, 128], strides = [1, 1, 1]} : vector<2x32x256xf32> to vector<2x32x128xf32>
    %61 = vector.extract_strided_slice %59 {offsets = [0, 0, 128], sizes = [2, 32, 128], strides = [1, 1, 1]} : vector<2x32x256xf32> to vector<2x32x128xf32>
    %62 = arith.maximumf %60, %61 : vector<2x32x128xf32>
    %63 = vector.extract_strided_slice %62 {offsets = [0, 2, 0], sizes = [2, 30, 128], strides = [1, 1, 1]} : vector<2x32x128xf32> to vector<2x30x128xf32>
    %64 = vector.extract_strided_slice %62 {offsets = [0, 0, 0], sizes = [2, 2, 128], strides = [1, 1, 1]} : vector<2x32x128xf32> to vector<2x2x128xf32>
    %65 = tpu.concatenate %63, %64 in 1 : vector<2x30x128xf32>, vector<2x2x128xf32> -> vector<2x32x128xf32>
    %66 = arith.maximumf %62, %65 : vector<2x32x128xf32>
    %c0_12 = arith.constant 0 : index
    %c0_13 = arith.constant 0 : index
    %67 = vector.load %arg5[%c0_12, %c0_13] : memref<1x128xf32, #tpu.memory_space<vmem>>, vector<1x128xf32>
    %68 = vector.shape_cast %67 : vector<1x128xf32> to vector<1x1x128xf32>
    %69 = vector.broadcast %68 : vector<1x1x128xf32> to vector<2x32x128xf32>
    %70 = arith.addf %66, %69 : vector<2x32x128xf32>
    %cst_14 = arith.constant 0.000000e+00 : f32
    %71 = vector.broadcast %cst_14 : f32 to vector<2x32x128xf32>
    %72 = arith.maximumf %70, %71 : vector<2x32x128xf32>
    %73 = arith.truncf %72 : vector<2x32x128xf32> to vector<2x32x128xbf16>
    %74 = vector.extract_strided_slice %73 {offsets = [0, 0, 0], sizes = [2, 1, 128], strides = [1, 1, 1]} : vector<2x32x128xbf16> to vector<2x1x128xbf16>
    %75 = vector.shape_cast %74 : vector<2x1x128xbf16> to vector<2x128xbf16>
    %76 = vector.extract_strided_slice %73 {offsets = [0, 4, 0], sizes = [2, 1, 128], strides = [1, 1, 1]} : vector<2x32x128xbf16> to vector<2x1x128xbf16>
    %77 = vector.shape_cast %76 : vector<2x1x128xbf16> to vector<2x128xbf16>
    %78 = vector.extract_strided_slice %73 {offsets = [0, 8, 0], sizes = [2, 1, 128], strides = [1, 1, 1]} : vector<2x32x128xbf16> to vector<2x1x128xbf16>
    %79 = vector.shape_cast %78 : vector<2x1x128xbf16> to vector<2x128xbf16>
    %80 = vector.extract_strided_slice %73 {offsets = [0, 12, 0], sizes = [2, 1, 128], strides = [1, 1, 1]} : vector<2x32x128xbf16> to vector<2x1x128xbf16>
    %81 = vector.shape_cast %80 : vector<2x1x128xbf16> to vector<2x128xbf16>
    %82 = vector.extract_strided_slice %73 {offsets = [0, 16, 0], sizes = [2, 1, 128], strides = [1, 1, 1]} : vector<2x32x128xbf16> to vector<2x1x128xbf16>
    %83 = vector.shape_cast %82 : vector<2x1x128xbf16> to vector<2x128xbf16>
    %84 = tpu.concatenate %75, %77, %79, %81, %83 in 1 : vector<2x128xbf16>, vector<2x128xbf16>, vector<2x128xbf16>, vector<2x128xbf16>, vector<2x128xbf16> -> vector<2x640xbf16>
    %c0_15 = arith.constant 0 : index
    %c0_16 = arith.constant 0 : index
    %85 = vector.load %arg6[%c0_15, %c0_16] : memref<640x128xbf16, #tpu.memory_space<vmem>>, vector<640x128xbf16>
    %cst_17 = arith.constant dense<0.000000e+00> : vector<2x128xf32>
    %86 = tpu.matmul %84, %85, %cst_17 {dimension_numbers = #tpu.dot_dimension_numbers<[1], [0], [0], [1], [0, 0, 1, 1], [], []>} : vector<2x640xbf16>, vector<640x128xbf16>, vector<2x128xf32> -> vector<2x128xf32>
    %c0_18 = arith.constant 0 : index
    %c0_19 = arith.constant 0 : index
    %87 = vector.load %arg7[%c0_18, %c0_19] : memref<1x128xf32, #tpu.memory_space<vmem>>, vector<1x128xf32>
    %88 = vector.broadcast %87 : vector<1x128xf32> to vector<2x128xf32>
    %89 = arith.addf %86, %88 : vector<2x128xf32>
    %cst_20 = arith.constant 0.000000e+00 : f32
    %90 = vector.broadcast %cst_20 : f32 to vector<2x128xf32>
    %91 = arith.maximumf %89, %90 : vector<2x128xf32>
    %92 = arith.truncf %91 : vector<2x128xf32> to vector<2x128xbf16>
    %c0_21 = arith.constant 0 : index
    %c0_22 = arith.constant 0 : index
    %93 = vector.load %arg8[%c0_21, %c0_22] : memref<128x128xbf16, #tpu.memory_space<vmem>>, vector<128x128xbf16>
    %cst_23 = arith.constant dense<0.000000e+00> : vector<2x128xf32>
    %94 = tpu.matmul %92, %93, %cst_23 {dimension_numbers = #tpu.dot_dimension_numbers<[1], [0], [0], [1], [0, 0, 1, 1], [], []>} : vector<2x128xbf16>, vector<128x128xbf16>, vector<2x128xf32> -> vector<2x128xf32>
    %c0_24 = arith.constant 0 : index
    %c0_25 = arith.constant 0 : index
    %95 = vector.load %arg9[%c0_24, %c0_25] : memref<1x128xf32, #tpu.memory_space<vmem>>, vector<1x128xf32>
    %96 = vector.broadcast %95 : vector<1x128xf32> to vector<2x128xf32>
    %97 = arith.addf %94, %96 : vector<2x128xf32>
    %cst_26 = arith.constant 0.000000e+00 : f32
    %98 = vector.broadcast %cst_26 : f32 to vector<2x128xf32>
    %99 = arith.maximumf %97, %98 : vector<2x128xf32>
    %100 = arith.truncf %99 : vector<2x128xf32> to vector<2x128xbf16>
    %c0_27 = arith.constant 0 : index
    %c0_28 = arith.constant 0 : index
    %101 = vector.load %arg10[%c0_27, %c0_28] : memref<128x128xbf16, #tpu.memory_space<vmem>>, vector<128x128xbf16>
    %cst_29 = arith.constant dense<0.000000e+00> : vector<2x128xf32>
    %102 = tpu.matmul %100, %101, %cst_29 {dimension_numbers = #tpu.dot_dimension_numbers<[1], [0], [0], [1], [0, 0, 1, 1], [], []>} : vector<2x128xbf16>, vector<128x128xbf16>, vector<2x128xf32> -> vector<2x128xf32>
    %c0_30 = arith.constant 0 : index
    %c0_31 = arith.constant 0 : index
    %103 = vector.load %arg11[%c0_30, %c0_31] : memref<1x128xf32, #tpu.memory_space<vmem>>, vector<1x128xf32>
    %104 = vector.broadcast %103 : vector<1x128xf32> to vector<2x128xf32>
    %105 = arith.addf %102, %104 : vector<2x128xf32>
    %c0_32 = arith.constant 0 : index
    %c0_33 = arith.constant 0 : index
    %106 = vector.load %arg12[%c0_32, %c0_33] : memref<2x128xf32, #tpu.memory_space<vmem>>, vector<2x128xf32>
    tpu.vector_store %arg12[%c0_32, %c0_33], %105 {strides = array<i32>} : memref<2x128xf32, #tpu.memory_space<vmem>>, vector<2x128xf32>,
    return
  }
  func.func @transform_0(%arg0: i32) -> (i32, i32, i32, i32) {
    %c0_i32 = arith.constant 0 : i32
    %c0_i32_0 = arith.constant 0 : i32
    %c0_i32_1 = arith.constant 0 : i32
    %c0_i32_2 = arith.constant 0 : i32
    return %arg0, %c0_i32, %c0_i32_0, %c0_i32_1 : i32, i32, i32, i32
  }
  func.func @transform_1(%arg0: i32) -> (i32, i32) {
    %c0_i32 = arith.constant 0 : i32
    %c0_i32_0 = arith.constant 0 : i32
    %c0_i32_1 = arith.constant 0 : i32
    return %c0_i32, %c0_i32_0 : i32, i32
  }
  func.func @transform_2(%arg0: i32) -> (i32, i32) {
    %c0_i32 = arith.constant 0 : i32
    %c0_i32_0 = arith.constant 0 : i32
    %c0_i32_1 = arith.constant 0 : i32
    return %c0_i32, %c0_i32_0 : i32, i32
  }
  func.func @transform_3(%arg0: i32) -> (i32, i32) {
    %c0_i32 = arith.constant 0 : i32
    %c0_i32_0 = arith.constant 0 : i32
    %c0_i32_1 = arith.constant 0 : i32
    return %c0_i32, %c0_i32_0 : i32, i32
  }
  func.func @transform_4(%arg0: i32) -> (i32, i32) {
    %c0_i32 = arith.constant 0 : i32
    %c0_i32_0 = arith.constant 0 : i32
    %c0_i32_1 = arith.constant 0 : i32
    return %c0_i32, %c0_i32_0 : i32, i32
  }
  func.func @transform_5(%arg0: i32) -> (i32, i32) {
    %c0_i32 = arith.constant 0 : i32
    %c0_i32_0 = arith.constant 0 : i32
    %c0_i32_1 = arith.constant 0 : i32
    return %c0_i32, %c0_i32_0 : i32, i32
  }
  func.func @transform_6(%arg0: i32) -> (i32, i32) {
    %c0_i32 = arith.constant 0 : i32
    %c0_i32_0 = arith.constant 0 : i32
    %c0_i32_1 = arith.constant 0 : i32
    return %c0_i32, %c0_i32_0 : i32, i32
  }
  func.func @transform_7(%arg0: i32) -> (i32, i32) {
    %c0_i32 = arith.constant 0 : i32
    %c0_i32_0 = arith.constant 0 : i32
    %c0_i32_1 = arith.constant 0 : i32
    return %c0_i32, %c0_i32_0 : i32, i32
  }
  func.func @transform_8(%arg0: i32) -> (i32, i32) {
    %c0_i32 = arith.constant 0 : i32
    %c0_i32_0 = arith.constant 0 : i32
    %c0_i32_1 = arith.constant 0 : i32
    return %c0_i32, %c0_i32_0 : i32, i32
  }
  func.func @transform_9(%arg0: i32) -> (i32, i32) {
    %c0_i32 = arith.constant 0 : i32
    %c0_i32_0 = arith.constant 0 : i32
    %c0_i32_1 = arith.constant 0 : i32
    return %c0_i32, %c0_i32_0 : i32, i32
  }
  func.func @transform_10(%arg0: i32) -> (i32, i32) {
    %c0_i32 = arith.constant 0 : i32
    %c0_i32_0 = arith.constant 0 : i32
    %c0_i32_1 = arith.constant 0 : i32
    return %c0_i32, %c0_i32_0 : i32, i32
  }
  func.func @transform_11(%arg0: i32) -> (i32, i32) {
    %c0_i32 = arith.constant 0 : i32
    %c0_i32_0 = arith.constant 0 : i32
    return %arg0, %c0_i32 : i32, i32
  }
}

</mosaic_0001>

<llo_original>
// kernel: tile.18
$region0: #{tile.18}
  #allocation0 [shape = 's32[1]{0}', space=sflag, size = 0x4, scoped, tag = 'scoped memory for tile.18']
  %s0 = inlined_call_operand.vmem [shape: f32[16], index: 0, kind: input, shape index: {}]
  %s1 = inlined_call_operand.vmem [shape: f32[5,16], index: 1, kind: output, shape index: {}]
  // Predicated region
  $region2: #{tile.18} parent=0 // pred_check
    _
  $region3: #{tile.18} parent=0 // pred_check_branch
    %3 = sbr.rel (0) target = $region5
  $region4: #{tile.18} parent=0 // pred_region
    _
  $region5: #{tile.18} parent=0 // pred_fallthru
    _
  %v4 = vld [vmem:[%s0] ss:$0 sm:$0xff]
  %5 = vst [vmem:[%s1] sm:$0xff] %v4

// kernel: tile.19
$region0: #{tile.19}
  %s0 = inlined_call_operand.vmem [shape: f32[5,16], index: 0, kind: input, shape index: {}]
  %s1 = inlined_call_operand.vmem [shape: f32[80], index: 1, kind: output, shape index: {}]
  $region1: #{tile.19} parent=0
    #allocation0 [shape = 'u8[4096]{0}', space=vmem, size = 0x1000, scoped, tag = 'scoped mem for output reshape']
    %v2 = vld [vmem:[%s0] sm:$0x1]
    %vm3 = vcmask 130048
    %4 = vst.msk [vmem:[#allocation0] sm:$0x1] %vm3, %v2
    %s5 = scalar_lea.vmem %s0, 4
    %v6 = vld [vmem:[%s5] sm:$0x1]
    %7 = vrot.lane.b32.xlu0 %v6, 64
    %v8 = vpop.permute.xlu0 %7
    %vm9 = vcmask 654848
    %10 = vst.msk [vmem:[#allocation0] sm:$0x1] %vm9, %v8
    %s11 = scalar_lea.vmem %s0, 3
    %v12 = vld [vmem:[%s11] sm:$0x1]
    %13 = vrot.lane.b32.xlu0 %v12, 48
    %v14 = vpop.permute.xlu0 %13
    %vm15 = vcmask 523648
    %16 = vst.msk [vmem:[#allocation0] sm:$0x1] %vm15, %v14
    %s17 = scalar_lea.vmem %s0, 2
    %v18 = vld [vmem:[%s17] sm:$0x1]
    %19 = vrot.lane.b32.xlu0 %v18, 32
    %v20 = vpop.permute.xlu0 %19
    %vm21 = vcmask 392448
    %22 = vst.msk [vmem:[#allocation0] sm:$0x1] %vm21, %v20
    %s23 = scalar_lea.vmem %s0, 1
    %v24 = vld [vmem:[%s23] sm:$0x1]
    %25 = vrot.lane.b32.xlu0 %v24, 16
    %v26 = vpop.permute.xlu0 %25
    %vm27 = vcmask 261248
    %28 = vst.msk [vmem:[#allocation0] sm:$0x1] %vm27, %v26
    %s30 = sshll.u32 1, 1
    %s31 = ssub.s32 %s30, 1
    %v33 = vld [vmem:[#allocation0] sm:%s31]
    %s34 = sshll.u32 1, 1
    %s35 = ssub.s32 %s34, 1
    %36 = vst [vmem:[%s1] sm:%s35] %v33

// kernel: tile.13
$region0: #{tile.13}
  #allocation0 [shape = 's32[1]{0}', space=sflag, size = 0x4, scoped, tag = 'scoped memory for tile.13']
  %s0 = inlined_call_operand.vmem [shape: f32[6], index: 0, kind: input, shape index: {}]
  %s1 = inlined_call_operand.vmem [shape: f32[14,6], index: 1, kind: output, shape index: {}]
  // Predicated region
  $region2: #{tile.13} parent=0 // pred_check
    _
  $region3: #{tile.13} parent=0 // pred_check_branch
    %3 = sbr.rel (0) target = $region5
  $region4: #{tile.13} parent=0 // pred_region
    _
  $region5: #{tile.13} parent=0 // pred_fallthru
    _
  %v4 = vld [vmem:[%s0] ss:$0 sm:$0xff]
  %5 = vst [vmem:[%s1] sm:$0xff] %v4
  %s6 = scalar_lea.vmem %s1, 8
  %7 = vst [vmem:[%s6] sm:$0xff] %v4

// kernel: tile.14
$region0: #{tile.14}
  %s0 = inlined_call_operand.vmem [shape: f32[14,6], index: 0, kind: input, shape index: {}]
  %s1 = inlined_call_operand.vmem [shape: f32[84], index: 1, kind: output, shape index: {}]
  $region1: #{tile.14} parent=0
    #allocation0 [shape = 'u8[4096]{0}', space=vmem, size = 0x1000, scoped, tag = 'scoped mem for output reshape']
    %v2 = vld [vmem:[%s0] sm:$0x1]
    %vm3 = vcmask 48128
    %4 = vst.msk [vmem:[#allocation0] sm:$0x1] %vm3, %v2
    %s5 = scalar_lea.vmem %s0, 13
    %v6 = vld [vmem:[%s5] sm:$0x1]
    %7 = vrot.lane.b32.xlu0 %v6, 78
    %v8 = vpop.permute.xlu0 %7
    %vm9 = vcmask 687728
    %10 = vst.msk [vmem:[#allocation0] sm:$0x1] %vm9, %v8
    %s11 = scalar_lea.vmem %s0, 12
    %v12 = vld [vmem:[%s11] sm:$0x1]
    %13 = vrot.lane.b32.xlu0 %v12, 72
    %v14 = vpop.permute.xlu0 %13
    %vm15 = vcmask 638528
    %16 = vst.msk [vmem:[#allocation0] sm:$0x1] %vm15, %v14
    %s17 = scalar_lea.vmem %s0, 11
    %v18 = vld [vmem:[%s17] sm:$0x1]
    %19 = vrot.lane.b32.xlu0 %v18, 66
    %v20 = vpop.permute.xlu0 %19
    %vm21 = vcmask 589328
    %22 = vst.msk [vmem:[#allocation0] sm:$0x1] %vm21, %v20
    %s23 = scalar_lea.vmem %s0, 10
    %v24 = vld [vmem:[%s23] sm:$0x1]
    %25 = vrot.lane.b32.xlu0 %v24, 60
    %v26 = vpop.permute.xlu0 %25
    %vm27 = vcmask 540128
    %28 = vst.msk [vmem:[#allocation0] sm:$0x1] %vm27, %v26
    %s29 = scalar_lea.vmem %s0, 9
    %v30 = vld [vmem:[%s29] sm:$0x1]
    %31 = vrot.lane.b32.xlu0 %v30, 54
    %v32 = vpop.permute.xlu0 %31
    %vm33 = vcmask 490928
    %34 = vst.msk [vmem:[#allocation0] sm:$0x1] %vm33, %v32
    %s35 = scalar_lea.vmem %s0, 8
    %v36 = vld [vmem:[%s35] sm:$0x1]
    %37 = vrot.lane.b32.xlu0 %v36, 48
    %v38 = vpop.permute.xlu0 %37
    %vm39 = vcmask 441728
    %40 = vst.msk [vmem:[#allocation0] sm:$0x1] %vm39, %v38
    %s41 = scalar_lea.vmem %s0, 7
    %v42 = vld [vmem:[%s41] sm:$0x1]
    %43 = vrot.lane.b32.xlu0 %v42, 42
    %v44 = vpop.permute.xlu0 %43
    %vm45 = vcmask 392528
    %46 = vst.msk [vmem:[#allocation0] sm:$0x1] %vm45, %v44
    %s47 = scalar_lea.vmem %s0, 6
    %v48 = vld [vmem:[%s47] sm:$0x1]
    %49 = vrot.lane.b32.xlu0 %v48, 36
    %v50 = vpop.permute.xlu0 %49
    %vm51 = vcmask 343328
    %52 = vst.msk [vmem:[#allocation0] sm:$0x1] %vm51, %v50
    %s53 = scalar_lea.vmem %s0, 5
    %v54 = vld [vmem:[%s53] sm:$0x1]
    %55 = vrot.lane.b32.xlu0 %v54, 30
    %v56 = vpop.permute.xlu0 %55
    %vm57 = vcmask 294128
    %58 = vst.msk [vmem:[#allocation0] sm:$0x1] %vm57, %v56
    %s59 = scalar_lea.vmem %s0, 4
    %v60 = vld [vmem:[%s59] sm:$0x1]
    %61 = vrot.lane.b32.xlu0 %v60, 24
    %v62 = vpop.permute.xlu0 %61
    %vm63 = vcmask 244928
    %64 = vst.msk [vmem:[#allocation0] sm:$0x1] %vm63, %v62
    %s65 = scalar_lea.vmem %s0, 3
    %v66 = vld [vmem:[%s65] sm:$0x1]
    %67 = vrot.lane.b32.xlu0 %v66, 18
    %v68 = vpop.permute.xlu0 %67
    %vm69 = vcmask 195728
    %70 = vst.msk [vmem:[#allocation0] sm:$0x1] %vm69, %v68
    %s71 = scalar_lea.vmem %s0, 2
    %v72 = vld [vmem:[%s71] sm:$0x1]
    %73 = vrot.lane.b32.xlu0 %v72, 12
    %v74 = vpop.permute.xlu0 %73
    %vm75 = vcmask 146528
    %76 = vst.msk [vmem:[#allocation0] sm:$0x1] %vm75, %v74
    %s77 = scalar_lea.vmem %s0, 1
    %v78 = vld [vmem:[%s77] sm:$0x1]
    %79 = vrot.lane.b32.xlu0 %v78, 6
    %v80 = vpop.permute.xlu0 %79
    %vm81 = vcmask 97328
    %82 = vst.msk [vmem:[#allocation0] sm:$0x1] %vm81, %v80
    %s84 = sshll.u32 1, 1
    %s85 = ssub.s32 %s84, 1
    %v87 = vld [vmem:[#allocation0] sm:%s85]
    %s88 = sshll.u32 1, 1
    %s89 = ssub.s32 %s88, 1
    %90 = vst [vmem:[%s1] sm:%s89] %v87

// kernel: net_forward.1
$region0: #{net_forward.1}
  #allocation0 [shape = 'u32[]', space=smem, size = 0x4, offset = 0x4, fixed_abs, tag = 'smem constant byte address 0x4 - core index']
  #allocation1 [shape = 'u32[144,128]{1,0:T(1,128)}', space=vmem, size = 0x12000, scoped, tag = 'internal scratch']
  %s0 = inlined_call_operand.vmem [shape: f32[2,3,32,32], index: 0, kind: input, shape index: {}]
  %s1 = inlined_call_operand.vmem [shape: bf16[640,256], index: 1, kind: input, shape index: {}]
  %s2 = inlined_call_operand.vmem [shape: f32[1,128], index: 2, kind: input, shape index: {}]
  %s3 = inlined_call_operand.vmem [shape: bf16[640,256], index: 3, kind: input, shape index: {}]
  %s4 = inlined_call_operand.vmem [shape: f32[1,128], index: 4, kind: input, shape index: {}]
  %s5 = inlined_call_operand.vmem [shape: bf16[640,128], index: 5, kind: input, shape index: {}]
  %s6 = inlined_call_operand.vmem [shape: f32[1,128], index: 6, kind: input, shape index: {}]
  %s7 = inlined_call_operand.vmem [shape: bf16[128,128], index: 7, kind: input, shape index: {}]
  %s8 = inlined_call_operand.vmem [shape: f32[1,128], index: 8, kind: input, shape index: {}]
  %s9 = inlined_call_operand.vmem [shape: bf16[128,128], index: 9, kind: input, shape index: {}]
  %s10 = inlined_call_operand.vmem [shape: f32[1,128], index: 10, kind: input, shape index: {}]
  %s11 = inlined_call_operand.hbm [shape: f32[2,128], index: 11, kind: output, shape index: {}]
  %s12 = sld [smem:[#allocation0]]
  $region54: #{net_forward.1} parent=0
    _
  %s14 = ssub.s32 1, %s12
  %s15 = scalar_select 0, %s14, %s12
  $region1: #{net_forward.1} parent=0
    #allocation2 [shape = 'u8[1024]{0}', space=vmem, size = 0x400, scoped, tag = 'output window, operand 0, single buffered']
    #allocation3 [shape = 's32[1]{0}', space=sflag, size = 0x4, scoped, tag = 'scoped memory for net_forward.1']
    %16 = vsyncpa [#allocation3], 0
    // Predicated region
    $region2: #{net_forward.1} parent=1 // pred_check
      _
    $region3: #{net_forward.1} parent=1 // pred_check_branch
      %18 = sbr.rel (0) target = $region5
    $region4: #{net_forward.1} parent=1 // pred_region
      _
    $region5: #{net_forward.1} parent=1 // pred_fallthru
      _
    // Predicated region
    $region6: #{net_forward.1} parent=1 // pred_check
      _
    $region7: #{net_forward.1} parent=1 // pred_check_branch
      %20 = sbr.rel (0) target = $region9
    $region8: #{net_forward.1} parent=1 // pred_region
      _
    $region9: #{net_forward.1} parent=1 // pred_fallthru
      _
    // Predicated region
    $region10: #{net_forward.1} parent=1 // pred_check
      _
    $region11: #{net_forward.1} parent=1 // pred_check_branch
      %22 = sbr.rel (0) target = $region13
    $region12: #{net_forward.1} parent=1 // pred_region
      _
    $region13: #{net_forward.1} parent=1 // pred_fallthru
      _
    // Predicated region
    $region14: #{net_forward.1} parent=1 // pred_check
      _
    $region15: #{net_forward.1} parent=1 // pred_check_branch
      %24 = sbr.rel (0) target = $region17
    $region16: #{net_forward.1} parent=1 // pred_region
      _
    $region17: #{net_forward.1} parent=1 // pred_fallthru
      _
    // Predicated region
    $region18: #{net_forward.1} parent=1 // pred_check
      _
    $region19: #{net_forward.1} parent=1 // pred_check_branch
      %26 = sbr.rel (0) target = $region21
    $region20: #{net_forward.1} parent=1 // pred_region
      _
    $region21: #{net_forward.1} parent=1 // pred_fallthru
      _
    // Predicated region
    $region22: #{net_forward.1} parent=1 // pred_check
      _
    $region23: #{net_forward.1} parent=1 // pred_check_branch
      %28 = sbr.rel (0) target = $region25
    $region24: #{net_forward.1} parent=1 // pred_region
      _
    $region25: #{net_forward.1} parent=1 // pred_fallthru
      _
    // Predicated region
    $region26: #{net_forward.1} parent=1 // pred_check
      _
    $region27: #{net_forward.1} parent=1 // pred_check_branch
      %30 = sbr.rel (0) target = $region29
    $region28: #{net_forward.1} parent=1 // pred_region
      _
    $region29: #{net_forward.1} parent=1 // pred_fallthru
      _
    // Predicated region
    $region30: #{net_forward.1} parent=1 // pred_check
      _
    $region31: #{net_forward.1} parent=1 // pred_check_branch
      %32 = sbr.rel (0) target = $region33
    $region32: #{net_forward.1} parent=1 // pred_region
      _
    $region33: #{net_forward.1} parent=1 // pred_fallthru
      _
    // Predicated region
    $region34: #{net_forward.1} parent=1 // pred_check
      _
    $region35: #{net_forward.1} parent=1 // pred_check_branch
      %34 = sbr.rel (0) target = $region37
    $region36: #{net_forward.1} parent=1 // pred_region
      _
    $region37: #{net_forward.1} parent=1 // pred_fallthru
      _
    // Predicated region
    $region38: #{net_forward.1} parent=1 // pred_check
      _
    $region39: #{net_forward.1} parent=1 // pred_check_branch
      %36 = sbr.rel (0) target = $region41
    $region40: #{net_forward.1} parent=1 // pred_region
      _
    $region41: #{net_forward.1} parent=1 // pred_fallthru
      _
    // Predicated region
    $region42: #{net_forward.1} parent=1 // pred_check
      _
    $region43: #{net_forward.1} parent=1 // pred_check_branch
      %38 = sbr.rel (0) target = $region45
    $region44: #{net_forward.1} parent=1 // pred_region
      _
    $region45: #{net_forward.1} parent=1 // pred_fallthru
      _
    %v40 = vld [vmem:[%s0] sm:$0xff]
    %v41 = vld [vmem:[%s0 + $0x8] sm:$0xff]
    %v42 = vld [vmem:[%s0 + $0x10] sm:$0xff]
    %v43 = vld [vmem:[%s0 + $0x18] sm:$0xff]
    %v44 = vld [vmem:[%s0 + $0x20] sm:$0xff]
    %v45 = vld [vmem:[%s0 + $0x28] sm:$0xff]
    %v46 = vld [vmem:[%s0 + $0x30] sm:$0xff]
    %v47 = vld [vmem:[%s0 + $0x38] sm:$0xff]
    %v48 = vld [vmem:[%s0 + $0x40] sm:$0xff]
    %v49 = vld [vmem:[%s0 + $0x48] sm:$0xff]
    %v50 = vld [vmem:[%s0 + $0x50] sm:$0xff]
    %v51 = vld [vmem:[%s0 + $0x58] sm:$0xff]
    %v52 = vld [vmem:[%s0 + $0x60] sm:$0xff]
    %v53 = vld [vmem:[%s0 + $0x68] sm:$0xff]
    %v54 = vld [vmem:[%s0 + $0x70] sm:$0xff]
    %v55 = vld [vmem:[%s0 + $0x78] sm:$0xff]
    %v56 = vld [vmem:[%s0 + $0x80] sm:$0xff]
    %v57 = vld [vmem:[%s0 + $0x88] sm:$0xff]
    %v58 = vld [vmem:[%s0 + $0x90] sm:$0xff]
    %v59 = vld [vmem:[%s0 + $0x98] sm:$0xff]
    %v60 = vld [vmem:[%s0 + $0xa0] sm:$0xff]
    %v61 = vld [vmem:[%s0 + $0xa8] sm:$0xff]
    %v62 = vld [vmem:[%s0 + $0xb0] sm:$0xff]
    %v63 = vld [vmem:[%s0 + $0xb8] sm:$0xff]
    %v64 = vpack.c.bf16 %v41, %v40
    %v65 = vpack.c.bf16 %v43, %v42
    %v66 = vpack.c.bf16 %v53, %v52
    %v67 = vpack.c.bf16 %v55, %v54
    %v68 = vpack.c.bf16 %v45, %v44
    %v69 = vpack.c.bf16 %v47, %v46
    %v70 = vpack.c.bf16 %v57, %v56
    %v71 = vpack.c.bf16 %v59, %v58
    %v72 = vpack.c.bf16 %v49, %v48
    %v73 = vpack.c.bf16 %v51, %v50
    %v74 = vpack.c.bf16 %v61, %v60
    %v75 = vpack.c.bf16 %v63, %v62
    %80 = vrot.lane.b32.xlu0 %v68, 32
    %v81 = vpop.permute.xlu0 %80
    %82 = vrot.lane.b32.xlu0 %v69, 32
    %v83 = vpop.permute.xlu0 %82
    %84 = vrot.lane.b32.xlu0 %v70, 32
    %v85 = vpop.permute.xlu0 %84
    %86 = vrot.lane.b32.xlu0 %v71, 32
    %v87 = vpop.permute.xlu0 %86
    %92 = vrot.lane.b32.xlu0 %v72, 64
    %v93 = vpop.permute.xlu0 %92
    %94 = vrot.lane.b32.xlu0 %v73, 64
    %v95 = vpop.permute.xlu0 %94
    %96 = vrot.lane.b32.xlu0 %v74, 64
    %v97 = vpop.permute.xlu0 %96
    %98 = vrot.lane.b32.xlu0 %v75, 64
    %v99 = vpop.permute.xlu0 %98
    %vm100 = vcmask 261120
    %v103 = vsel %vm100, %v64, %v81
    %v106 = vsel %vm100, %v65, %v83
    %v109 = vsel %vm100, %v66, %v85
    %v112 = vsel %vm100, %v67, %v87
    %vm113 = vcmask 523264
    %v115 = vsel %vm113, %v103, %v93
    %v117 = vsel %vm113, %v106, %v95
    %v119 = vsel %vm113, %v109, %v97
    %v121 = vsel %vm113, %v112, %v99
    %vm122 = vcmask 785408
    %v124 = vsel %vm122, %v115, 0
    %v126 = vsel %vm122, %v117, 0
    %v128 = vsel %vm122, %v119, 0
    %v130 = vsel %vm122, %v121, 0
    %vm132 = vsmask.f32 7424
    %v133 = vshrl.u32 %v124, 16
    %v135 = vshll.u32 %v124, 16
    %v137 = vrot.slane %v135, 1
    %v138 = vor.u32 %v133, %v137
    %v139 = vshll.u32 %v126, 16
    %v141 = vrot.slane %v139, 1
    %v142 = vsel %vm132, %v138, %v141
    %v143 = vshrl.u32 %v126, 16
    %v145 = vor.u32 %v143, %v141
    %v146 = vshrl.u32 %v128, 16
    %v148 = vshll.u32 %v128, 16
    %v150 = vrot.slane %v148, 1
    %v151 = vor.u32 %v146, %v150
    %v152 = vshll.u32 %v130, 16
    %v154 = vrot.slane %v152, 1
    %v155 = vsel %vm132, %v151, %v154
    %v156 = vshrl.u32 %v130, 16
    %v158 = vor.u32 %v156, %v154
    %vm165 = vcmask 1047552
    %vm166 = vmand %vm165, %vm132
    %v167 = vsel %vm166, %v145, %v137
    %v168 = vsel %vm166, %v158, %v150
    %vm173 = vcmask 1046528
    %v174 = vrot.slane %v124, 1
    %v175 = vrot.slane %v126, 1
    %v176 = vsel %vm173, %v174, %v175
    %v177 = vrot.slane %v128, 1
    %v178 = vrot.slane %v130, 1
    %v179 = vsel %vm173, %v177, %v178
    %vm182 = vcmask 1046528
    %v185 = vsel %vm182, %v175, %v174
    %v189 = vsel %vm182, %v178, %v177
    %vm191 = vsmask.f32 6400
    %v192 = vrot.slane %v133, 1
    %v193 = vrot.slane %v135, 2
    %v194 = vor.u32 %v192, %v193
    %v195 = vrot.slane %v143, 1
    %v196 = vrot.slane %v139, 2
    %v197 = vor.u32 %v195, %v196
    %v198 = vsel %vm191, %v194, %v197
    %v199 = vrot.slane %v146, 1
    %v200 = vrot.slane %v148, 2
    %v201 = vor.u32 %v199, %v200
    %v202 = vrot.slane %v156, 1
    %v203 = vrot.slane %v152, 2
    %v204 = vor.u32 %v202, %v203
    %v205 = vsel %vm191, %v201, %v204
    %vm212 = vmand %vm173, %vm191
    %v213 = vsel %vm212, %v197, %v194
    %v214 = vsel %vm212, %v204, %v201
    %vm215 = vcmask 1045504
    %v216 = vrot.slane %v124, 2
    %v217 = vrot.slane %v126, 2
    %v218 = vsel %vm215, %v216, %v217
    %v219 = vrot.slane %v128, 2
    %v220 = vrot.slane %v130, 2
    %v221 = vsel %vm215, %v219, %v220
    %vm224 = vcmask 1045504
    %v227 = vsel %vm224, %v217, %v216
    %v231 = vsel %vm224, %v220, %v219
    %v233 = vld [vmem:[%s1] sm:$0xff]
    %v234 = vld [vmem:[%s1 + $0x8] sm:$0xff]
    %v235 = vld [vmem:[%s1 + $0x10] sm:$0xff]
    %v236 = vld [vmem:[%s1 + $0x18] sm:$0xff]
    %v237 = vld [vmem:[%s1 + $0x20] sm:$0xff]
    %v238 = vld [vmem:[%s1 + $0x28] sm:$0xff]
    %v239 = vld [vmem:[%s1 + $0x30] sm:$0xff]
    %v240 = vld [vmem:[%s1 + $0x38] sm:$0xff]
    %v241 = vld [vmem:[%s1 + $0x40] sm:$0xff]
    %v242 = vld [vmem:[%s1 + $0x48] sm:$0xff]
    %v243 = vld [vmem:[%s1 + $0x50] sm:$0xff]
    %v244 = vld [vmem:[%s1 + $0x58] sm:$0xff]
    %v245 = vld [vmem:[%s1 + $0x60] sm:$0xff]
    %v246 = vld [vmem:[%s1 + $0x68] sm:$0xff]
    %v247 = vld [vmem:[%s1 + $0x70] sm:$0xff]
    %v248 = vld [vmem:[%s1 + $0x78] sm:$0xff]
    %v249 = vld [vmem:[%s1 + $0x80] sm:$0xff]
    %v250 = vld [vmem:[%s1 + $0x88] sm:$0xff]
    %v251 = vld [vmem:[%s1 + $0x90] sm:$0xff]
    %v252 = vld [vmem:[%s1 + $0x98] sm:$0xff]
    %v253 = vld [vmem:[%s1 + $0xa0] sm:$0xff]
    %v254 = vld [vmem:[%s1 + $0xa8] sm:$0xff]
    %v255 = vld [vmem:[%s1 + $0xb0] sm:$0xff]
    %v256 = vld [vmem:[%s1 + $0xb8] sm:$0xff]
    %v257 = vld [vmem:[%s1 + $0xc0] sm:$0xff]
    %v258 = vld [vmem:[%s1 + $0xc8] sm:$0xff]
    %v259 = vld [vmem:[%s1 + $0xd0] sm:$0xff]
    %v260 = vld [vmem:[%s1 + $0xd8] sm:$0xff]
    %v261 = vld [vmem:[%s1 + $0xe0] sm:$0xff]
    %v262 = vld [vmem:[%s1 + $0xe8] sm:$0xff]
    %v263 = vld [vmem:[%s1 + $0xf0] sm:$0xff]
    %v264 = vld [vmem:[%s1 + $0xf8] sm:$0xff]
    %v265 = vld [vmem:[%s1 + $0x100] sm:$0xff]
    %v266 = vld [vmem:[%s1 + $0x108] sm:$0xff]
    %v267 = vld [vmem:[%s1 + $0x110] sm:$0xff]
    %v268 = vld [vmem:[%s1 + $0x118] sm:$0xff]
    %v269 = vld [vmem:[%s1 + $0x120] sm:$0xff]
    %v270 = vld [vmem:[%s1 + $0x128] sm:$0xff]
    %v271 = vld [vmem:[%s1 + $0x130] sm:$0xff]
    %v272 = vld [vmem:[%s1 + $0x138] sm:$0xff]
    %v273 = vld [vmem:[%s1 + $0x140] sm:$0xff]
    %v274 = vld [vmem:[%s1 + $0x148] sm:$0xff]
    %v275 = vld [vmem:[%s1 + $0x150] sm:$0xff]
    %v276 = vld [vmem:[%s1 + $0x158] sm:$0xff]
    %v277 = vld [vmem:[%s1 + $0x160] sm:$0xff]
    %v278 = vld [vmem:[%s1 + $0x168] sm:$0xff]
    %v279 = vld [vmem:[%s1 + $0x170] sm:$0xff]
    %v280 = vld [vmem:[%s1 + $0x178] sm:$0xff]
    %v281 = vld [vmem:[%s1 + $0x180] sm:$0xff]
    %v282 = vld [vmem:[%s1 + $0x188] sm:$0xff]
    %v283 = vld [vmem:[%s1 + $0x190] sm:$0xff]
    %v284 = vld [vmem:[%s1 + $0x198] sm:$0xff]
    %v285 = vld [vmem:[%s1 + $0x1a0] sm:$0xff]
    %v286 = vld [vmem:[%s1 + $0x1a8] sm:$0xff]
    %v287 = vld [vmem:[%s1 + $0x1b0] sm:$0xff]
    %v288 = vld [vmem:[%s1 + $0x1b8] sm:$0xff]
    %v289 = vld [vmem:[%s1 + $0x1c0] sm:$0xff]
    %v290 = vld [vmem:[%s1 + $0x1c8] sm:$0xff]
    %v291 = vld [vmem:[%s1 + $0x1d0] sm:$0xff]
    %v292 = vld [vmem:[%s1 + $0x1d8] sm:$0xff]
    %v293 = vld [vmem:[%s1 + $0x1e0] sm:$0xff]
    %v294 = vld [vmem:[%s1 + $0x1e8] sm:$0xff]
    %v295 = vld [vmem:[%s1 + $0x1f0] sm:$0xff]
    %v296 = vld [vmem:[%s1 + $0x1f8] sm:$0xff]
    %v297 = vld [vmem:[%s1 + $0x200] sm:$0xff]
    %v298 = vld [vmem:[%s1 + $0x208] sm:$0xff]
    %v299 = vld [vmem:[%s1 + $0x210] sm:$0xff]
    %v300 = vld [vmem:[%s1 + $0x218] sm:$0xff]
    %v301 = vld [vmem:[%s1 + $0x220] sm:$0xff]
    %v302 = vld [vmem:[%s1 + $0x228] sm:$0xff]
    %v303 = vld [vmem:[%s1 + $0x230] sm:$0xff]
    %v304 = vld [vmem:[%s1 + $0x238] sm:$0xff]
    %v305 = vld [vmem:[%s1 + $0x240] sm:$0xff]
    %v306 = vld [vmem:[%s1 + $0x248] sm:$0xff]
    %v307 = vld [vmem:[%s1 + $0x250] sm:$0xff]
    %v308 = vld [vmem:[%s1 + $0x258] sm:$0xff]
    %v309 = vld [vmem:[%s1 + $0x260] sm:$0xff]
    %v310 = vld [vmem:[%s1 + $0x268] sm:$0xff]
    %v311 = vld [vmem:[%s1 + $0x270] sm:$0xff]
    %v312 = vld [vmem:[%s1 + $0x278] sm:$0xff]
    %v393 = vunpack.c.l.b16 %v233
    %v394 = vunpack.c.h.b16 %v233
    %v395 = vunpack.c.l.b16 %v234
    %v396 = vunpack.c.h.b16 %v234
    %v397 = vunpack.c.l.b16 %v235
    %v398 = vunpack.c.h.b16 %v235
    %v399 = vunpack.c.l.b16 %v236
    %v400 = vunpack.c.h.b16 %v236
    %v401 = vunpack.c.l.b16 %v237
    %v402 = vunpack.c.h.b16 %v237
    %v403 = vunpack.c.l.b16 %v238
    %v404 = vunpack.c.h.b16 %v238
    %v405 = vunpack.c.l.b16 %v239
    %v406 = vunpack.c.h.b16 %v239
    %v407 = vunpack.c.l.b16 %v240
    %v408 = vunpack.c.h.b16 %v240
    %v409 = vunpack.c.l.b16 %v241
    %v410 = vunpack.c.h.b16 %v241
    %v411 = vunpack.c.l.b16 %v242
    %v412 = vunpack.c.h.b16 %v242
    %v413 = vunpack.c.l.b16 %v243
    %v414 = vunpack.c.h.b16 %v243
    %v415 = vunpack.c.l.b16 %v244
    %v416 = vunpack.c.h.b16 %v244
    %v417 = vunpack.c.l.b16 %v245
    %v418 = vunpack.c.h.b16 %v245
    %v419 = vunpack.c.l.b16 %v246
    %v420 = vunpack.c.h.b16 %v246
    %v421 = vunpack.c.l.b16 %v247
    %v422 = vunpack.c.h.b16 %v247
    %v423 = vunpack.c.l.b16 %v248
    %v424 = vunpack.c.h.b16 %v248
    %v425 = vunpack.c.l.b16 %v249
    %v426 = vunpack.c.h.b16 %v249
    %v427 = vunpack.c.l.b16 %v250
    %v428 = vunpack.c.h.b16 %v250
    %v429 = vunpack.c.l.b16 %v251
    %v430 = vunpack.c.h.b16 %v251
    %v431 = vunpack.c.l.b16 %v252
    %v432 = vunpack.c.h.b16 %v252
    %v433 = vunpack.c.l.b16 %v253
    %v434 = vunpack.c.h.b16 %v253
    %v435 = vunpack.c.l.b16 %v254
    %v436 = vunpack.c.h.b16 %v254
    %v437 = vunpack.c.l.b16 %v255
    %v438 = vunpack.c.h.b16 %v255
    %v439 = vunpack.c.l.b16 %v256
    %v440 = vunpack.c.h.b16 %v256
    %v441 = vunpack.c.l.b16 %v257
    %v442 = vunpack.c.h.b16 %v257
    %v443 = vunpack.c.l.b16 %v258
    %v444 = vunpack.c.h.b16 %v258
    %v445 = vunpack.c.l.b16 %v259
    %v446 = vunpack.c.h.b16 %v259
    %v447 = vunpack.c.l.b16 %v260
    %v448 = vunpack.c.h.b16 %v260
    %v449 = vunpack.c.l.b16 %v261
    %v450 = vunpack.c.h.b16 %v261
    %v451 = vunpack.c.l.b16 %v262
    %v452 = vunpack.c.h.b16 %v262
    %v453 = vunpack.c.l.b16 %v263
    %v454 = vunpack.c.h.b16 %v263
    %v455 = vunpack.c.l.b16 %v264
    %v456 = vunpack.c.h.b16 %v264
    %v457 = vunpack.c.l.b16 %v265
    %v458 = vunpack.c.h.b16 %v265
    %v459 = vunpack.c.l.b16 %v266
    %v460 = vunpack.c.h.b16 %v266
    %v461 = vunpack.c.l.b16 %v267
    %v462 = vunpack.c.h.b16 %v267
    %v463 = vunpack.c.l.b16 %v268
    %v464 = vunpack.c.h.b16 %v268
    %v465 = vunpack.c.l.b16 %v269
    %v466 = vunpack.c.h.b16 %v269
    %v467 = vunpack.c.l.b16 %v270
    %v468 = vunpack.c.h.b16 %v270
    %v469 = vunpack.c.l.b16 %v271
    %v470 = vunpack.c.h.b16 %v271
    %v471 = vunpack.c.l.b16 %v272
    %v472 = vunpack.c.h.b16 %v272
    %v473 = vunpack.c.l.b16 %v273
    %v474 = vunpack.c.h.b16 %v273
    %v475 = vunpack.c.l.b16 %v274
    %v476 = vunpack.c.h.b16 %v274
    %v477 = vunpack.c.l.b16 %v275
    %v478 = vunpack.c.h.b16 %v275
    %v479 = vunpack.c.l.b16 %v276
    %v480 = vunpack.c.h.b16 %v276
    %v481 = vunpack.c.l.b16 %v277
    %v482 = vunpack.c.h.b16 %v277
    %v483 = vunpack.c.l.b16 %v278
    %v484 = vunpack.c.h.b16 %v278
    %v485 = vunpack.c.l.b16 %v279
    %v486 = vunpack.c.h.b16 %v279
    %v487 = vunpack.c.l.b16 %v280
    %v488 = vunpack.c.h.b16 %v280
    %v489 = vunpack.c.l.b16 %v281
    %v490 = vunpack.c.h.b16 %v281
    %v491 = vunpack.c.l.b16 %v282
    %v492 = vunpack.c.h.b16 %v282
    %v493 = vunpack.c.l.b16 %v283
    %v494 = vunpack.c.h.b16 %v283
    %v495 = vunpack.c.l.b16 %v284
    %v496 = vunpack.c.h.b16 %v284
    %v497 = vunpack.c.l.b16 %v285
    %v498 = vunpack.c.h.b16 %v285
    %v499 = vunpack.c.l.b16 %v286
    %v500 = vunpack.c.h.b16 %v286
    %v501 = vunpack.c.l.b16 %v287
    %v502 = vunpack.c.h.b16 %v287
    %v503 = vunpack.c.l.b16 %v288
    %v504 = vunpack.c.h.b16 %v288
    %v505 = vunpack.c.l.b16 %v289
    %v506 = vunpack.c.h.b16 %v289
    %v507 = vunpack.c.l.b16 %v290
    %v508 = vunpack.c.h.b16 %v290
    %v509 = vunpack.c.l.b16 %v291
    %v510 = vunpack.c.h.b16 %v291
    %v511 = vunpack.c.l.b16 %v292
    %v512 = vunpack.c.h.b16 %v292
    %v513 = vunpack.c.l.b16 %v293
    %v514 = vunpack.c.h.b16 %v293
    %v515 = vunpack.c.l.b16 %v294
    %v516 = vunpack.c.h.b16 %v294
    %v517 = vunpack.c.l.b16 %v295
    %v518 = vunpack.c.h.b16 %v295
    %v519 = vunpack.c.l.b16 %v296
    %v520 = vunpack.c.h.b16 %v296
    %v521 = vunpack.c.l.b16 %v297
    %v522 = vunpack.c.h.b16 %v297
    %v523 = vunpack.c.l.b16 %v298
    %v524 = vunpack.c.h.b16 %v298
    %v525 = vunpack.c.l.b16 %v299
    %v526 = vunpack.c.h.b16 %v299
    %v527 = vunpack.c.l.b16 %v300
    %v528 = vunpack.c.h.b16 %v300
    %v529 = vunpack.c.l.b16 %v301
    %v530 = vunpack.c.h.b16 %v301
    %v531 = vunpack.c.l.b16 %v302
    %v532 = vunpack.c.h.b16 %v302
    %v533 = vunpack.c.l.b16 %v303
    %v534 = vunpack.c.h.b16 %v303
    %v535 = vunpack.c.l.b16 %v304
    %v536 = vunpack.c.h.b16 %v304
    %v537 = vunpack.c.l.b16 %v305
    %v538 = vunpack.c.h.b16 %v305
    %v539 = vunpack.c.l.b16 %v306
    %v540 = vunpack.c.h.b16 %v306
    %v541 = vunpack.c.l.b16 %v307
    %v542 = vunpack.c.h.b16 %v307
    %v543 = vunpack.c.l.b16 %v308
    %v544 = vunpack.c.h.b16 %v308
    %v545 = vunpack.c.l.b16 %v309
    %v546 = vunpack.c.h.b16 %v309
    %v547 = vunpack.c.l.b16 %v310
    %v548 = vunpack.c.h.b16 %v310
    %v549 = vunpack.c.l.b16 %v311
    %v550 = vunpack.c.h.b16 %v311
    %v551 = vunpack.c.l.b16 %v312
    %v552 = vunpack.c.h.b16 %v312
    %v553 = vpack.c.b16 %v395, %v393
    %v554 = vpack.c.b16 %v396, %v394
    %v555 = vpack.c.b16 %v399, %v397
    %v556 = vpack.c.b16 %v400, %v398
    %v557 = vpack.c.b16 %v403, %v401
    %v558 = vpack.c.b16 %v404, %v402
    %v559 = vpack.c.b16 %v407, %v405
    %v560 = vpack.c.b16 %v408, %v406
    %v561 = vpack.c.b16 %v411, %v409
    %v562 = vpack.c.b16 %v412, %v410
    %v563 = vpack.c.b16 %v415, %v413
    %v564 = vpack.c.b16 %v416, %v414
    %v565 = vpack.c.b16 %v419, %v417
    %v566 = vpack.c.b16 %v420, %v418
    %v567 = vpack.c.b16 %v423, %v421
    %v568 = vpack.c.b16 %v424, %v422
    %v569 = vpack.c.b16 %v427, %v425
    %v570 = vpack.c.b16 %v428, %v426
    %v571 = vpack.c.b16 %v431, %v429
    %v572 = vpack.c.b16 %v432, %v430
    %v573 = vpack.c.b16 %v435, %v433
    %v574 = vpack.c.b16 %v436, %v434
    %v575 = vpack.c.b16 %v439, %v437
    %v576 = vpack.c.b16 %v440, %v438
    %v577 = vpack.c.b16 %v443, %v441
    %v578 = vpack.c.b16 %v444, %v442
    %v579 = vpack.c.b16 %v447, %v445
    %v580 = vpack.c.b16 %v448, %v446
    %v581 = vpack.c.b16 %v451, %v449
    %v582 = vpack.c.b16 %v452, %v450
    %v583 = vpack.c.b16 %v455, %v453
    %v584 = vpack.c.b16 %v456, %v454
    %v585 = vpack.c.b16 %v459, %v457
    %v586 = vpack.c.b16 %v460, %v458
    %v587 = vpack.c.b16 %v463, %v461
    %v588 = vpack.c.b16 %v464, %v462
    %v589 = vpack.c.b16 %v467, %v465
    %v590 = vpack.c.b16 %v468, %v466
    %v591 = vpack.c.b16 %v471, %v469
    %v592 = vpack.c.b16 %v472, %v470
    %v593 = vpack.c.b16 %v475, %v473
    %v594 = vpack.c.b16 %v476, %v474
    %v595 = vpack.c.b16 %v479, %v477
    %v596 = vpack.c.b16 %v480, %v478
    %v597 = vpack.c.b16 %v483, %v481
    %v598 = vpack.c.b16 %v484, %v482
    %v599 = vpack.c.b16 %v487, %v485
    %v600 = vpack.c.b16 %v488, %v486
    %v601 = vpack.c.b16 %v491, %v489
    %v602 = vpack.c.b16 %v492, %v490
    %v603 = vpack.c.b16 %v495, %v493
    %v604 = vpack.c.b16 %v496, %v494
    %v605 = vpack.c.b16 %v499, %v497
    %v606 = vpack.c.b16 %v500, %v498
    %v607 = vpack.c.b16 %v503, %v501
    %v608 = vpack.c.b16 %v504, %v502
    %v609 = vpack.c.b16 %v507, %v505
    %v610 = vpack.c.b16 %v508, %v506
    %v611 = vpack.c.b16 %v511, %v509
    %v612 = vpack.c.b16 %v512, %v510
    %v613 = vpack.c.b16 %v515, %v513
    %v614 = vpack.c.b16 %v516, %v514
    %v615 = vpack.c.b16 %v519, %v517
    %v616 = vpack.c.b16 %v520, %v518
    %v617 = vpack.c.b16 %v523, %v521
    %v618 = vpack.c.b16 %v524, %v522
    %v619 = vpack.c.b16 %v527, %v525
    %v620 = vpack.c.b16 %v528, %v526
    %v621 = vpack.c.b16 %v531, %v529
    %v622 = vpack.c.b16 %v532, %v530
    %v623 = vpack.c.b16 %v535, %v533
    %v624 = vpack.c.b16 %v536, %v534
    %v625 = vpack.c.b16 %v539, %v537
    %v626 = vpack.c.b16 %v540, %v538
    %v627 = vpack.c.b16 %v543, %v541
    %v628 = vpack.c.b16 %v544, %v542
    %v629 = vpack.c.b16 %v547, %v545
    %v630 = vpack.c.b16 %v548, %v546
    %v631 = vpack.c.b16 %v551, %v549
    %v632 = vpack.c.b16 %v552, %v550
    %713 = vmatprep.subr.bf16.mxu0 %v568
    %714 = vmatpush1.bf16.msra.mxu0 %v567
    %715 = vmatprep.subr.bf16.mxu0 %v566
    %716 = vmatpush1.bf16.msra.mxu0 %v565
    %717 = vmatprep.subr.bf16.mxu0 %v564
    %718 = vmatpush1.bf16.msra.mxu0 %v563
    %719 = vmatprep.subr.bf16.mxu0 %v562
    %720 = vmatpush1.bf16.msra.mxu0 %v561
    %721 = vmatprep.subr.bf16.mxu0 %v560
    %722 = vmatpush1.bf16.msra.mxu0 %v559
    %723 = vmatprep.subr.bf16.mxu0 %v558
    %724 = vmatpush1.bf16.msra.mxu0 %v557
    %725 = vmatprep.subr.bf16.mxu0 %v556
    %726 = vmatpush1.bf16.msra.mxu0 %v555
    %727 = vmatprep.subr.bf16.mxu0 %v554
    %728 = vmatpush1.bf16.msra.mxu0 %v553
    %729 = vmatprep.subr.bf16.mxu0 %v584
    %730 = vmatpush2.bf16.msra.mxu0 %v583
    %731 = vmatprep.subr.bf16.mxu0 %v582
    %732 = vmatpush2.bf16.msra.mxu0 %v581
    %733 = vmatprep.subr.bf16.mxu0 %v580
    %734 = vmatpush2.bf16.msra.mxu0 %v579
    %735 = vmatprep.subr.bf16.mxu0 %v578
    %736 = vmatpush2.bf16.msra.mxu0 %v577
    %737 = vmatprep.subr.bf16.mxu0 %v576
    %738 = vmatpush2.bf16.msra.mxu0 %v575
    %739 = vmatprep.subr.bf16.mxu0 %v574
    %740 = vmatpush2.bf16.msra.mxu0 %v573
    %741 = vmatprep.subr.bf16.mxu0 %v572
    %742 = vmatpush2.bf16.msra.mxu0 %v571
    %743 = vmatprep.subr.bf16.mxu0 %v570
    %744 = vmatpush2.bf16.msra.mxu0 %v569
    %745 = vmatprep.mubr.bf16.mxu0 %v142
    %746 = vmatmul.mubr.bf16.gmra.mxu0 %v124
    %v747 = vpop.f32.mrf.mxu0
    %v748 = vadd.f32 0.0, %v747
    %v749 = vpop.f32.mrf.mxu0
    %v750 = vadd.f32 0.0, %v749
    %v751 = vpop.f32.mrf.mxu0
    %v752 = vadd.f32 0.0, %v751
    %v753 = vpop.f32.mrf.mxu0
    %v754 = vadd.f32 0.0, %v753
    %755 = vmatprep.mubr.bf16.mxu0 %v167
    %756 = vmatmul.mubr.bf16.gmra.mxu0 %v126
    %v757 = vpop.f32.mrf.mxu0
    %v758 = vadd.f32 0.0, %v757
    %v759 = vpop.f32.mrf.mxu0
    %v760 = vadd.f32 0.0, %v759
    %v761 = vpop.f32.mrf.mxu0
    %v762 = vadd.f32 0.0, %v761
    %v763 = vpop.f32.mrf.mxu0
    %v764 = vadd.f32 0.0, %v763
    %765 = vmatprep.mubr.bf16.mxu0 %v155
    %766 = vmatmul.mubr.bf16.gmra.mxu0 %v128
    %v767 = vpop.f32.mrf.mxu0
    %v768 = vadd.f32 0.0, %v767
    %v769 = vpop.f32.mrf.mxu0
    %v770 = vadd.f32 0.0, %v769
    %v771 = vpop.f32.mrf.mxu0
    %v772 = vadd.f32 0.0, %v771
    %v773 = vpop.f32.mrf.mxu0
    %v774 = vadd.f32 0.0, %v773
    %775 = vmatprep.mubr.bf16.mxu0 %v168
    %776 = vmatmul.mubr.bf16.gmra.mxu0 %v130
    %v777 = vpop.f32.mrf.mxu0
    %v778 = vadd.f32 0.0, %v777
    %v779 = vpop.f32.mrf.mxu0
    %v780 = vadd.f32 0.0, %v779
    %v781 = vpop.f32.mrf.mxu0
    %v782 = vadd.f32 0.0, %v781
    %v783 = vpop.f32.mrf.mxu0
    %v784 = vadd.f32 0.0, %v783
    %785 = vdwg.mxu0
    %786 = vmatprep.subr.bf16.mxu0 %v600
    %787 = vmatpush1.bf16.msra.mxu0 %v599
    %788 = vmatprep.subr.bf16.mxu0 %v598
    %789 = vmatpush1.bf16.msra.mxu0 %v597
    %790 = vmatprep.subr.bf16.mxu0 %v596
    %791 = vmatpush1.bf16.msra.mxu0 %v595
    %792 = vmatprep.subr.bf16.mxu0 %v594
    %793 = vmatpush1.bf16.msra.mxu0 %v593
    %794 = vmatprep.subr.bf16.mxu0 %v592
    %795 = vmatpush1.bf16.msra.mxu0 %v591
    %796 = vmatprep.subr.bf16.mxu0 %v590
    %797 = vmatpush1.bf16.msra.mxu0 %v589
    %798 = vmatprep.subr.bf16.mxu0 %v588
    %799 = vmatpush1.bf16.msra.mxu0 %v587
    %800 = vmatprep.subr.bf16.mxu0 %v586
    %801 = vmatpush1.bf16.msra.mxu0 %v585
    %802 = vmatprep.subr.bf16.mxu0 %v616
    %803 = vmatpush2.bf16.msra.mxu0 %v615
    %804 = vmatprep.subr.bf16.mxu0 %v614
    %805 = vmatpush2.bf16.msra.mxu0 %v613
    %806 = vmatprep.subr.bf16.mxu0 %v612
    %807 = vmatpush2.bf16.msra.mxu0 %v611
    %808 = vmatprep.subr.bf16.mxu0 %v610
    %809 = vmatpush2.bf16.msra.mxu0 %v609
    %810 = vmatprep.subr.bf16.mxu0 %v608
    %811 = vmatpush2.bf16.msra.mxu0 %v607
    %812 = vmatprep.subr.bf16.mxu0 %v606
    %813 = vmatpush2.bf16.msra.mxu0 %v605
    %814 = vmatprep.subr.bf16.mxu0 %v604
    %815 = vmatpush2.bf16.msra.mxu0 %v603
    %816 = vmatprep.subr.bf16.mxu0 %v602
    %817 = vmatpush2.bf16.msra.mxu0 %v601
    %818 = vmatprep.mubr.bf16.mxu0 %v198
    %819 = vmatmul.mubr.bf16.gmra.mxu0 %v176
    %v820 = vpop.f32.mrf.mxu0
    %v821 = vadd.f32 %v748, %v820
    %v822 = vpop.f32.mrf.mxu0
    %v823 = vadd.f32 %v750, %v822
    %v824 = vpop.f32.mrf.mxu0
    %v825 = vadd.f32 %v752, %v824
    %v826 = vpop.f32.mrf.mxu0
    %v827 = vadd.f32 %v754, %v826
    %828 = vmatprep.mubr.bf16.mxu0 %v213
    %829 = vmatmul.mubr.bf16.gmra.mxu0 %v185
    %v830 = vpop.f32.mrf.mxu0
    %v831 = vadd.f32 %v758, %v830
    %v832 = vpop.f32.mrf.mxu0
    %v833 = vadd.f32 %v760, %v832
    %v834 = vpop.f32.mrf.mxu0
    %v835 = vadd.f32 %v762, %v834
    %v836 = vpop.f32.mrf.mxu0
    %v837 = vadd.f32 %v764, %v836
    %838 = vmatprep.mubr.bf16.mxu0 %v205
    %839 = vmatmul.mubr.bf16.gmra.mxu0 %v179
    %v840 = vpop.f32.mrf.mxu0
    %v841 = vadd.f32 %v768, %v840
    %v842 = vpop.f32.mrf.mxu0
    %v843 = vadd.f32 %v770, %v842
    %v844 = vpop.f32.mrf.mxu0
    %v845 = vadd.f32 %v772, %v844
    %v846 = vpop.f32.mrf.mxu0
    %v847 = vadd.f32 %v774, %v846
    %848 = vmatprep.mubr.bf16.mxu0 %v214
    %849 = vmatmul.mubr.bf16.gmra.mxu0 %v189
    %v850 = vpop.f32.mrf.mxu0
    %v851 = vadd.f32 %v778, %v850
    %v852 = vpop.f32.mrf.mxu0
    %v853 = vadd.f32 %v780, %v852
    %v854 = vpop.f32.mrf.mxu0
    %v855 = vadd.f32 %v782, %v854
    %v856 = vpop.f32.mrf.mxu0
    %v857 = vadd.f32 %v784, %v856
    %858 = vdwg.mxu0
    %859 = vmatprep.subr.bf16.mxu0 %v632
    %860 = vmatpush1.bf16.msra.mxu0 %v631
    %861 = vmatprep.subr.bf16.mxu0 %v630
    %862 = vmatpush1.bf16.msra.mxu0 %v629
    %863 = vmatprep.subr.bf16.mxu0 %v628
    %864 = vmatpush1.bf16.msra.mxu0 %v627
    %865 = vmatprep.subr.bf16.mxu0 %v626
    %866 = vmatpush1.bf16.msra.mxu0 %v625
    %867 = vmatprep.subr.bf16.mxu0 %v624
    %868 = vmatpush1.bf16.msra.mxu0 %v623
    %869 = vmatprep.subr.bf16.mxu0 %v622
    %870 = vmatpush1.bf16.msra.mxu0 %v621
    %871 = vmatprep.subr.bf16.mxu0 %v620
    %872 = vmatpush1.bf16.msra.mxu0 %v619
    %873 = vmatprep.subr.bf16.mxu0 %v618
    %874 = vmatpush1.bf16.msra.mxu0 %v617
    %875 = vmatprep.subr.bf16.mxu0 0
    %876 = vmatpush2.bf16.msra.mxu0 0
    %877 = vmatprep.subr.bf16.mxu0 0
    %878 = vmatpush2.bf16.msra.mxu0 0
    %879 = vmatprep.subr.bf16.mxu0 0
    %880 = vmatpush2.bf16.msra.mxu0 0
    %881 = vmatprep.subr.bf16.mxu0 0
    %882 = vmatpush2.bf16.msra.mxu0 0
    %883 = vmatprep.subr.bf16.mxu0 0
    %884 = vmatpush2.bf16.msra.mxu0 0
    %885 = vmatprep.subr.bf16.mxu0 0
    %886 = vmatpush2.bf16.msra.mxu0 0
    %887 = vmatprep.subr.bf16.mxu0 0
    %888 = vmatpush2.bf16.msra.mxu0 0
    %889 = vmatprep.subr.bf16.mxu0 0
    %890 = vmatpush2.bf16.msra.mxu0 0
    %891 = vmatprep.mubr.bf16.mxu0 0
    %892 = vmatmul.mubr.bf16.gmra.mxu0 %v218
    %v893 = vpop.f32.mrf.mxu0
    %v894 = vadd.f32 %v821, %v893
    %v895 = vpop.f32.mrf.mxu0
    %v896 = vadd.f32 %v823, %v895
    %v897 = vpop.f32.mrf.mxu0
    %v898 = vadd.f32 %v825, %v897
    %v899 = vpop.f32.mrf.mxu0
    %v900 = vadd.f32 %v827, %v899
    %901 = vmatprep.mubr.bf16.mxu0 0
    %902 = vmatmul.mubr.bf16.gmra.mxu0 %v227
    %v903 = vpop.f32.mrf.mxu0
    %v904 = vadd.f32 %v831, %v903
    %v905 = vpop.f32.mrf.mxu0
    %v906 = vadd.f32 %v833, %v905
    %v907 = vpop.f32.mrf.mxu0
    %v908 = vadd.f32 %v835, %v907
    %v909 = vpop.f32.mrf.mxu0
    %v910 = vadd.f32 %v837, %v909
    %911 = vmatprep.mubr.bf16.mxu0 0
    %912 = vmatmul.mubr.bf16.gmra.mxu0 %v221
    %v913 = vpop.f32.mrf.mxu0
    %v914 = vadd.f32 %v841, %v913
    %v915 = vpop.f32.mrf.mxu0
    %v916 = vadd.f32 %v843, %v915
    %v917 = vpop.f32.mrf.mxu0
    %v918 = vadd.f32 %v845, %v917
    %v919 = vpop.f32.mrf.mxu0
    %v920 = vadd.f32 %v847, %v919
    %921 = vmatprep.mubr.bf16.mxu0 0
    %922 = vmatmul.mubr.bf16.gmra.mxu0 %v231
    %v923 = vpop.f32.mrf.mxu0
    %v924 = vadd.f32 %v851, %v923
    %v925 = vpop.f32.mrf.mxu0
    %v926 = vadd.f32 %v853, %v925
    %v927 = vpop.f32.mrf.mxu0
    %v928 = vadd.f32 %v855, %v927
    %v929 = vpop.f32.mrf.mxu0
    %v930 = vadd.f32 %v857, %v929
    %931 = vdwg.mxu0
    %v932 = vmax.f32 %v894, %v896
    %v933 = vmax.f32 %v898, %v900
    %v934 = vmax.f32 %v904, %v906
    %v935 = vmax.f32 %v908, %v910
    %v936 = vmax.f32 %v914, %v916
    %v937 = vmax.f32 %v918, %v920
    %v938 = vmax.f32 %v924, %v926
    %v939 = vmax.f32 %v928, %v930
    %v948 = vrot.slane %v932, 1
    %v949 = vrot.slane %v933, 1
    %v950 = vsel %vm182, %v948, %v949
    %v951 = vrot.slane %v934, 1
    %v952 = vsel %vm182, %v949, %v951
    %v953 = vrot.slane %v935, 1
    %v954 = vsel %vm182, %v951, %v953
    %v955 = vrot.slane %v936, 1
    %v956 = vrot.slane %v937, 1
    %v957 = vsel %vm182, %v955, %v956
    %v958 = vrot.slane %v938, 1
    %v959 = vsel %vm182, %v956, %v958
    %v960 = vrot.slane %v939, 1
    %v961 = vsel %vm182, %v958, %v960
    %v972 = vsel %vm182, %v953, %v948
    %v973 = vsel %vm182, %v960, %v955
    %v974 = vmax.f32 %v932, %v950
    %v975 = vmax.f32 %v933, %v952
    %v976 = vmax.f32 %v934, %v954
    %v977 = vmax.f32 %v935, %v972
    %v978 = vmax.f32 %v936, %v957
    %v979 = vmax.f32 %v937, %v959
    %v980 = vmax.f32 %v938, %v961
    %v981 = vmax.f32 %v939, %v973
    %v982 = vld [vmem:[%s2] sm:$0x1]
    %v984 = vlaneseq
    %v985 = vshrl.u32 %v984, 7
    %v986 = vsub.s32 0, %v985
    %v987 = vrot.slane %v982, %v986
    %v989 = vadd.f32 %v974, %v987
    %v990 = vadd.f32 %v975, %v987
    %v991 = vadd.f32 %v976, %v987
    %v992 = vadd.f32 %v977, %v987
    %v993 = vadd.f32 %v978, %v987
    %v994 = vadd.f32 %v979, %v987
    %v995 = vadd.f32 %v980, %v987
    %v996 = vadd.f32 %v981, %v987
    %v997 = vmax.f32 %v989, 0.0
    %v998 = vmax.f32 %v990, 0.0
    %v999 = vmax.f32 %v991, 0.0
    %v1000 = vmax.f32 %v992, 0.0
    %v1001 = vmax.f32 %v993, 0.0
    %v1002 = vmax.f32 %v994, 0.0
    %v1003 = vmax.f32 %v995, 0.0
    %v1004 = vmax.f32 %v996, 0.0
    %v1005 = vpack.c.bf16 %v998, %v997
    %v1006 = vpack.c.bf16 %v1000, %v999
    %v1007 = vpack.c.bf16 %v1002, %v1001
    %v1008 = vpack.c.bf16 %v1004, %v1003
    %v1013 = vrot.slane %v1005, 1
    %v1014 = vrot.slane %v1006, 1
    %v1015 = vsel %vm173, %v1013, %v1014
    %v1016 = vrot.slane %v1007, 1
    %v1017 = vrot.slane %v1008, 1
    %v1018 = vsel %vm173, %v1016, %v1017
    %v1023 = vsel %vm182, %v1014, %v1013
    %v1027 = vsel %vm182, %v1017, %v1016
    %v1029 = vrot.slane %v1005, 2
    %v1030 = vrot.slane %v1006, 2
    %v1031 = vsel %vm215, %v1029, %v1030
    %v1032 = vrot.slane %v1007, 2
    %v1033 = vrot.slane %v1008, 2
    %v1034 = vsel %vm215, %v1032, %v1033
    %v1039 = vsel %vm224, %v1030, %v1029
    %v1043 = vsel %vm224, %v1033, %v1032
    %vm1045 = vcmask 1044480
    %v1046 = vrot.slane %v1005, 3
    %v1047 = vrot.slane %v1006, 3
    %v1048 = vsel %vm1045, %v1046, %v1047
    %v1049 = vrot.slane %v1007, 3
    %v1050 = vrot.slane %v1008, 3
    %v1051 = vsel %vm1045, %v1049, %v1050
    %vm1054 = vcmask 1044480
    %v1057 = vsel %vm1054, %v1047, %v1046
    %v1061 = vsel %vm1054, %v1050, %v1049
    %vm1063 = vcmask 1043456
    %v1064 = vrot.slane %v1005, 4
    %v1065 = vrot.slane %v1006, 4
    %v1066 = vsel %vm1063, %v1064, %v1065
    %v1067 = vrot.slane %v1007, 4
    %v1068 = vrot.slane %v1008, 4
    %v1069 = vsel %vm1063, %v1067, %v1068
    %vm1072 = vcmask 1043456
    %v1075 = vsel %vm1072, %v1065, %v1064
    %v1079 = vsel %vm1072, %v1068, %v1067
    %v1081 = vld [vmem:[%s3] sm:$0xff]
    %v1082 = vld [vmem:[%s3 + $0x8] sm:$0xff]
    %v1083 = vld [vmem:[%s3 + $0x10] sm:$0xff]
    %v1084 = vld [vmem:[%s3 + $0x18] sm:$0xff]
    %v1085 = vld [vmem:[%s3 + $0x20] sm:$0xff]
    %v1086 = vld [vmem:[%s3 + $0x28] sm:$0xff]
    %v1087 = vld [vmem:[%s3 + $0x30] sm:$0xff]
    %v1088 = vld [vmem:[%s3 + $0x38] sm:$0xff]
    %v1089 = vld [vmem:[%s3 + $0x40] sm:$0xff]
    %v1090 = vld [vmem:[%s3 + $0x48] sm:$0xff]
    %v1091 = vld [vmem:[%s3 + $0x50] sm:$0xff]
    %v1092 = vld [vmem:[%s3 + $0x58] sm:$0xff]
    %v1093 = vld [vmem:[%s3 + $0x60] sm:$0xff]
    %v1094 = vld [vmem:[%s3 + $0x68] sm:$0xff]
    %v1095 = vld [vmem:[%s3 + $0x70] sm:$0xff]
    %v1096 = vld [vmem:[%s3 + $0x78] sm:$0xff]
    %v1097 = vld [vmem:[%s3 + $0x80] sm:$0xff]
    %v1098 = vld [vmem:[%s3 + $0x88] sm:$0xff]
    %v1099 = vld [vmem:[%s3 + $0x90] sm:$0xff]
    %v1100 = vld [vmem:[%s3 + $0x98] sm:$0xff]
    %v1101 = vld [vmem:[%s3 + $0xa0] sm:$0xff]
    %v1102 = vld [vmem:[%s3 + $0xa8] sm:$0xff]
    %v1103 = vld [vmem:[%s3 + $0xb0] sm:$0xff]
    %v1104 = vld [vmem:[%s3 + $0xb8] sm:$0xff]
    %v1105 = vld [vmem:[%s3 + $0xc0] sm:$0xff]
    %v1106 = vld [vmem:[%s3 + $0xc8] sm:$0xff]
    %v1107 = vld [vmem:[%s3 + $0xd0] sm:$0xff]
    %v1108 = vld [vmem:[%s3 + $0xd8] sm:$0xff]
    %v1109 = vld [vmem:[%s3 + $0xe0] sm:$0xff]
    %v1110 = vld [vmem:[%s3 + $0xe8] sm:$0xff]
    %v1111 = vld [vmem:[%s3 + $0xf0] sm:$0xff]
    %v1112 = vld [vmem:[%s3 + $0xf8] sm:$0xff]
    %v1113 = vld [vmem:[%s3 + $0x100] sm:$0xff]
    %v1114 = vld [vmem:[%s3 + $0x108] sm:$0xff]
    %v1115 = vld [vmem:[%s3 + $0x110] sm:$0xff]
    %v1116 = vld [vmem:[%s3 + $0x118] sm:$0xff]
    %v1117 = vld [vmem:[%s3 + $0x120] sm:$0xff]
    %v1118 = vld [vmem:[%s3 + $0x128] sm:$0xff]
    %v1119 = vld [vmem:[%s3 + $0x130] sm:$0xff]
    %v1120 = vld [vmem:[%s3 + $0x138] sm:$0xff]
    %v1121 = vld [vmem:[%s3 + $0x140] sm:$0xff]
    %v1122 = vld [vmem:[%s3 + $0x148] sm:$0xff]
    %v1123 = vld [vmem:[%s3 + $0x150] sm:$0xff]
    %v1124 = vld [vmem:[%s3 + $0x158] sm:$0xff]
    %v1125 = vld [vmem:[%s3 + $0x160] sm:$0xff]
    %v1126 = vld [vmem:[%s3 + $0x168] sm:$0xff]
    %v1127 = vld [vmem:[%s3 + $0x170] sm:$0xff]
    %v1128 = vld [vmem:[%s3 + $0x178] sm:$0xff]
    %v1129 = vld [vmem:[%s3 + $0x180] sm:$0xff]
    %v1130 = vld [vmem:[%s3 + $0x188] sm:$0xff]
    %v1131 = vld [vmem:[%s3 + $0x190] sm:$0xff]
    %v1132 = vld [vmem:[%s3 + $0x198] sm:$0xff]
    %v1133 = vld [vmem:[%s3 + $0x1a0] sm:$0xff]
    %v1134 = vld [vmem:[%s3 + $0x1a8] sm:$0xff]
    %v1135 = vld [vmem:[%s3 + $0x1b0] sm:$0xff]
    %v1136 = vld [vmem:[%s3 + $0x1b8] sm:$0xff]
    %v1137 = vld [vmem:[%s3 + $0x1c0] sm:$0xff]
    %v1138 = vld [vmem:[%s3 + $0x1c8] sm:$0xff]
    %v1139 = vld [vmem:[%s3 + $0x1d0] sm:$0xff]
    %v1140 = vld [vmem:[%s3 + $0x1d8] sm:$0xff]
    %v1141 = vld [vmem:[%s3 + $0x1e0] sm:$0xff]
    %v1142 = vld [vmem:[%s3 + $0x1e8] sm:$0xff]
    %v1143 = vld [vmem:[%s3 + $0x1f0] sm:$0xff]
    %v1144 = vld [vmem:[%s3 + $0x1f8] sm:$0xff]
    %v1145 = vld [vmem:[%s3 + $0x200] sm:$0xff]
    %v1146 = vld [vmem:[%s3 + $0x208] sm:$0xff]
    %v1147 = vld [vmem:[%s3 + $0x210] sm:$0xff]
    %v1148 = vld [vmem:[%s3 + $0x218] sm:$0xff]
    %v1149 = vld [vmem:[%s3 + $0x220] sm:$0xff]
    %v1150 = vld [vmem:[%s3 + $0x228] sm:$0xff]
    %v1151 = vld [vmem:[%s3 + $0x230] sm:$0xff]
    %v1152 = vld [vmem:[%s3 + $0x238] sm:$0xff]
    %v1153 = vld [vmem:[%s3 + $0x240] sm:$0xff]
    %v1154 = vld [vmem:[%s3 + $0x248] sm:$0xff]
    %v1155 = vld [vmem:[%s3 + $0x250] sm:$0xff]
    %v1156 = vld [vmem:[%s3 + $0x258] sm:$0xff]
    %v1157 = vld [vmem:[%s3 + $0x260] sm:$0xff]
    %v1158 = vld [vmem:[%s3 + $0x268] sm:$0xff]
    %v1159 = vld [vmem:[%s3 + $0x270] sm:$0xff]
    %v1160 = vld [vmem:[%s3 + $0x278] sm:$0xff]
    %v1241 = vunpack.c.l.b16 %v1081
    %v1242 = vunpack.c.h.b16 %v1081
    %v1243 = vunpack.c.l.b16 %v1082
    %v1244 = vunpack.c.h.b16 %v1082
    %v1245 = vunpack.c.l.b16 %v1083
    %v1246 = vunpack.c.h.b16 %v1083
    %v1247 = vunpack.c.l.b16 %v1084
    %v1248 = vunpack.c.h.b16 %v1084
    %v1249 = vunpack.c.l.b16 %v1085
    %v1250 = vunpack.c.h.b16 %v1085
    %v1251 = vunpack.c.l.b16 %v1086
    %v1252 = vunpack.c.h.b16 %v1086
    %v1253 = vunpack.c.l.b16 %v1087
    %v1254 = vunpack.c.h.b16 %v1087
    %v1255 = vunpack.c.l.b16 %v1088
    %v1256 = vunpack.c.h.b16 %v1088
    %v1257 = vunpack.c.l.b16 %v1089
    %v1258 = vunpack.c.h.b16 %v1089
    %v1259 = vunpack.c.l.b16 %v1090
    %v1260 = vunpack.c.h.b16 %v1090
    %v1261 = vunpack.c.l.b16 %v1091
    %v1262 = vunpack.c.h.b16 %v1091
    %v1263 = vunpack.c.l.b16 %v1092
    %v1264 = vunpack.c.h.b16 %v1092
    %v1265 = vunpack.c.l.b16 %v1093
    %v1266 = vunpack.c.h.b16 %v1093
    %v1267 = vunpack.c.l.b16 %v1094
    %v1268 = vunpack.c.h.b16 %v1094
    %v1269 = vunpack.c.l.b16 %v1095
    %v1270 = vunpack.c.h.b16 %v1095
    %v1271 = vunpack.c.l.b16 %v1096
    %v1272 = vunpack.c.h.b16 %v1096
    %v1273 = vunpack.c.l.b16 %v1097
    %v1274 = vunpack.c.h.b16 %v1097
    %v1275 = vunpack.c.l.b16 %v1098
    %v1276 = vunpack.c.h.b16 %v1098
    %v1277 = vunpack.c.l.b16 %v1099
    %v1278 = vunpack.c.h.b16 %v1099
    %v1279 = vunpack.c.l.b16 %v1100
    %v1280 = vunpack.c.h.b16 %v1100
    %v1281 = vunpack.c.l.b16 %v1101
    %v1282 = vunpack.c.h.b16 %v1101
    %v1283 = vunpack.c.l.b16 %v1102
    %v1284 = vunpack.c.h.b16 %v1102
    %v1285 = vunpack.c.l.b16 %v1103
    %v1286 = vunpack.c.h.b16 %v1103
    %v1287 = vunpack.c.l.b16 %v1104
    %v1288 = vunpack.c.h.b16 %v1104
    %v1289 = vunpack.c.l.b16 %v1105
    %v1290 = vunpack.c.h.b16 %v1105
    %v1291 = vunpack.c.l.b16 %v1106
    %v1292 = vunpack.c.h.b16 %v1106
    %v1293 = vunpack.c.l.b16 %v1107
    %v1294 = vunpack.c.h.b16 %v1107
    %v1295 = vunpack.c.l.b16 %v1108
    %v1296 = vunpack.c.h.b16 %v1108
    %v1297 = vunpack.c.l.b16 %v1109
    %v1298 = vunpack.c.h.b16 %v1109
    %v1299 = vunpack.c.l.b16 %v1110
    %v1300 = vunpack.c.h.b16 %v1110
    %v1301 = vunpack.c.l.b16 %v1111
    %v1302 = vunpack.c.h.b16 %v1111
    %v1303 = vunpack.c.l.b16 %v1112
    %v1304 = vunpack.c.h.b16 %v1112
    %v1305 = vunpack.c.l.b16 %v1113
    %v1306 = vunpack.c.h.b16 %v1113
    %v1307 = vunpack.c.l.b16 %v1114
    %v1308 = vunpack.c.h.b16 %v1114
    %v1309 = vunpack.c.l.b16 %v1115
    %v1310 = vunpack.c.h.b16 %v1115
    %v1311 = vunpack.c.l.b16 %v1116
    %v1312 = vunpack.c.h.b16 %v1116
    %v1313 = vunpack.c.l.b16 %v1117
    %v1314 = vunpack.c.h.b16 %v1117
    %v1315 = vunpack.c.l.b16 %v1118
    %v1316 = vunpack.c.h.b16 %v1118
    %v1317 = vunpack.c.l.b16 %v1119
    %v1318 = vunpack.c.h.b16 %v1119
    %v1319 = vunpack.c.l.b16 %v1120
    %v1320 = vunpack.c.h.b16 %v1120
    %v1321 = vunpack.c.l.b16 %v1121
    %v1322 = vunpack.c.h.b16 %v1121
    %v1323 = vunpack.c.l.b16 %v1122
    %v1324 = vunpack.c.h.b16 %v1122
    %v1325 = vunpack.c.l.b16 %v1123
    %v1326 = vunpack.c.h.b16 %v1123
    %v1327 = vunpack.c.l.b16 %v1124
    %v1328 = vunpack.c.h.b16 %v1124
    %v1329 = vunpack.c.l.b16 %v1125
    %v1330 = vunpack.c.h.b16 %v1125
    %v1331 = vunpack.c.l.b16 %v1126
    %v1332 = vunpack.c.h.b16 %v1126
    %v1333 = vunpack.c.l.b16 %v1127
    %v1334 = vunpack.c.h.b16 %v1127
    %v1335 = vunpack.c.l.b16 %v1128
    %v1336 = vunpack.c.h.b16 %v1128
    %v1337 = vunpack.c.l.b16 %v1129
    %v1338 = vunpack.c.h.b16 %v1129
    %v1339 = vunpack.c.l.b16 %v1130
    %v1340 = vunpack.c.h.b16 %v1130
    %v1341 = vunpack.c.l.b16 %v1131
    %v1342 = vunpack.c.h.b16 %v1131
    %v1343 = vunpack.c.l.b16 %v1132
    %v1344 = vunpack.c.h.b16 %v1132
    %v1345 = vunpack.c.l.b16 %v1133
    %v1346 = vunpack.c.h.b16 %v1133
    %v1347 = vunpack.c.l.b16 %v1134
    %v1348 = vunpack.c.h.b16 %v1134
    %v1349 = vunpack.c.l.b16 %v1135
    %v1350 = vunpack.c.h.b16 %v1135
    %v1351 = vunpack.c.l.b16 %v1136
    %v1352 = vunpack.c.h.b16 %v1136
    %v1353 = vunpack.c.l.b16 %v1137
    %v1354 = vunpack.c.h.b16 %v1137
    %v1355 = vunpack.c.l.b16 %v1138
    %v1356 = vunpack.c.h.b16 %v1138
    %v1357 = vunpack.c.l.b16 %v1139
    %v1358 = vunpack.c.h.b16 %v1139
    %v1359 = vunpack.c.l.b16 %v1140
    %v1360 = vunpack.c.h.b16 %v1140
    %v1361 = vunpack.c.l.b16 %v1141
    %v1362 = vunpack.c.h.b16 %v1141
    %v1363 = vunpack.c.l.b16 %v1142
    %v1364 = vunpack.c.h.b16 %v1142
    %v1365 = vunpack.c.l.b16 %v1143
    %v1366 = vunpack.c.h.b16 %v1143
    %v1367 = vunpack.c.l.b16 %v1144
    %v1368 = vunpack.c.h.b16 %v1144
    %v1369 = vunpack.c.l.b16 %v1145
    %v1370 = vunpack.c.h.b16 %v1145
    %v1371 = vunpack.c.l.b16 %v1146
    %v1372 = vunpack.c.h.b16 %v1146
    %v1373 = vunpack.c.l.b16 %v1147
    %v1374 = vunpack.c.h.b16 %v1147
    %v1375 = vunpack.c.l.b16 %v1148
    %v1376 = vunpack.c.h.b16 %v1148
    %v1377 = vunpack.c.l.b16 %v1149
    %v1378 = vunpack.c.h.b16 %v1149
    %v1379 = vunpack.c.l.b16 %v1150
    %v1380 = vunpack.c.h.b16 %v1150
    %v1381 = vunpack.c.l.b16 %v1151
    %v1382 = vunpack.c.h.b16 %v1151
    %v1383 = vunpack.c.l.b16 %v1152
    %v1384 = vunpack.c.h.b16 %v1152
    %v1385 = vunpack.c.l.b16 %v1153
    %v1386 = vunpack.c.h.b16 %v1153
    %v1387 = vunpack.c.l.b16 %v1154
    %v1388 = vunpack.c.h.b16 %v1154
    %v1389 = vunpack.c.l.b16 %v1155
    %v1390 = vunpack.c.h.b16 %v1155
    %v1391 = vunpack.c.l.b16 %v1156
    %v1392 = vunpack.c.h.b16 %v1156
    %v1393 = vunpack.c.l.b16 %v1157
    %v1394 = vunpack.c.h.b16 %v1157
    %v1395 = vunpack.c.l.b16 %v1158
    %v1396 = vunpack.c.h.b16 %v1158
    %v1397 = vunpack.c.l.b16 %v1159
    %v1398 = vunpack.c.h.b16 %v1159
    %v1399 = vunpack.c.l.b16 %v1160
    %v1400 = vunpack.c.h.b16 %v1160
    %v1401 = vpack.c.b16 %v1243, %v1241
    %v1402 = vpack.c.b16 %v1244, %v1242
    %v1403 = vpack.c.b16 %v1247, %v1245
    %v1404 = vpack.c.b16 %v1248, %v1246
    %v1405 = vpack.c.b16 %v1251, %v1249
    %v1406 = vpack.c.b16 %v1252, %v1250
    %v1407 = vpack.c.b16 %v1255, %v1253
    %v1408 = vpack.c.b16 %v1256, %v1254
    %v1409 = vpack.c.b16 %v1259, %v1257
    %v1410 = vpack.c.b16 %v1260, %v1258
    %v1411 = vpack.c.b16 %v1263, %v1261
    %v1412 = vpack.c.b16 %v1264, %v1262
    %v1413 = vpack.c.b16 %v1267, %v1265
    %v1414 = vpack.c.b16 %v1268, %v1266
    %v1415 = vpack.c.b16 %v1271, %v1269
    %v1416 = vpack.c.b16 %v1272, %v1270
    %v1417 = vpack.c.b16 %v1275, %v1273
    %v1418 = vpack.c.b16 %v1276, %v1274
    %v1419 = vpack.c.b16 %v1279, %v1277
    %v1420 = vpack.c.b16 %v1280, %v1278
    %v1421 = vpack.c.b16 %v1283, %v1281
    %v1422 = vpack.c.b16 %v1284, %v1282
    %v1423 = vpack.c.b16 %v1287, %v1285
    %v1424 = vpack.c.b16 %v1288, %v1286
    %v1425 = vpack.c.b16 %v1291, %v1289
    %v1426 = vpack.c.b16 %v1292, %v1290
    %v1427 = vpack.c.b16 %v1295, %v1293
    %v1428 = vpack.c.b16 %v1296, %v1294
    %v1429 = vpack.c.b16 %v1299, %v1297
    %v1430 = vpack.c.b16 %v1300, %v1298
    %v1431 = vpack.c.b16 %v1303, %v1301
    %v1432 = vpack.c.b16 %v1304, %v1302
    %v1433 = vpack.c.b16 %v1307, %v1305
    %v1434 = vpack.c.b16 %v1308, %v1306
    %v1435 = vpack.c.b16 %v1311, %v1309
    %v1436 = vpack.c.b16 %v1312, %v1310
    %v1437 = vpack.c.b16 %v1315, %v1313
    %v1438 = vpack.c.b16 %v1316, %v1314
    %v1439 = vpack.c.b16 %v1319, %v1317
    %v1440 = vpack.c.b16 %v1320, %v1318
    %v1441 = vpack.c.b16 %v1323, %v1321
    %v1442 = vpack.c.b16 %v1324, %v1322
    %v1443 = vpack.c.b16 %v1327, %v1325
    %v1444 = vpack.c.b16 %v1328, %v1326
    %v1445 = vpack.c.b16 %v1331, %v1329
    %v1446 = vpack.c.b16 %v1332, %v1330
    %v1447 = vpack.c.b16 %v1335, %v1333
    %v1448 = vpack.c.b16 %v1336, %v1334
    %v1449 = vpack.c.b16 %v1339, %v1337
    %v1450 = vpack.c.b16 %v1340, %v1338
    %v1451 = vpack.c.b16 %v1343, %v1341
    %v1452 = vpack.c.b16 %v1344, %v1342
    %v1453 = vpack.c.b16 %v1347, %v1345
    %v1454 = vpack.c.b16 %v1348, %v1346
    %v1455 = vpack.c.b16 %v1351, %v1349
    %v1456 = vpack.c.b16 %v1352, %v1350
    %v1457 = vpack.c.b16 %v1355, %v1353
    %v1458 = vpack.c.b16 %v1356, %v1354
    %v1459 = vpack.c.b16 %v1359, %v1357
    %v1460 = vpack.c.b16 %v1360, %v1358
    %v1461 = vpack.c.b16 %v1363, %v1361
    %v1462 = vpack.c.b16 %v1364, %v1362
    %v1463 = vpack.c.b16 %v1367, %v1365
    %v1464 = vpack.c.b16 %v1368, %v1366
    %v1465 = vpack.c.b16 %v1371, %v1369
    %v1466 = vpack.c.b16 %v1372, %v1370
    %v1467 = vpack.c.b16 %v1375, %v1373
    %v1468 = vpack.c.b16 %v1376, %v1374
    %v1469 = vpack.c.b16 %v1379, %v1377
    %v1470 = vpack.c.b16 %v1380, %v1378
    %v1471 = vpack.c.b16 %v1383, %v1381
    %v1472 = vpack.c.b16 %v1384, %v1382
    %v1473 = vpack.c.b16 %v1387, %v1385
    %v1474 = vpack.c.b16 %v1388, %v1386
    %v1475 = vpack.c.b16 %v1391, %v1389
    %v1476 = vpack.c.b16 %v1392, %v1390
    %v1477 = vpack.c.b16 %v1395, %v1393
    %v1478 = vpack.c.b16 %v1396, %v1394
    %v1479 = vpack.c.b16 %v1399, %v1397
    %v1480 = vpack.c.b16 %v1400, %v1398
    %1561 = vmatprep.subr.bf16.mxu0 %v1416
    %1562 = vmatpush1.bf16.msra.mxu0 %v1415
    %1563 = vmatprep.subr.bf16.mxu0 %v1414
    %1564 = vmatpush1.bf16.msra.mxu0 %v1413
    %1565 = vmatprep.subr.bf16.mxu0 %v1412
    %1566 = vmatpush1.bf16.msra.mxu0 %v1411
    %1567 = vmatprep.subr.bf16.mxu0 %v1410
    %1568 = vmatpush1.bf16.msra.mxu0 %v1409
    %1569 = vmatprep.subr.bf16.mxu0 %v1408
    %1570 = vmatpush1.bf16.msra.mxu0 %v1407
    %1571 = vmatprep.subr.bf16.mxu0 %v1406
    %1572 = vmatpush1.bf16.msra.mxu0 %v1405
    %1573 = vmatprep.subr.bf16.mxu0 %v1404
    %1574 = vmatpush1.bf16.msra.mxu0 %v1403
    %1575 = vmatprep.subr.bf16.mxu0 %v1402
    %1576 = vmatpush1.bf16.msra.mxu0 %v1401
    %1577 = vmatprep.subr.bf16.mxu0 %v1432
    %1578 = vmatpush2.bf16.msra.mxu0 %v1431
    %1579 = vmatprep.subr.bf16.mxu0 %v1430
    %1580 = vmatpush2.bf16.msra.mxu0 %v1429
    %1581 = vmatprep.subr.bf16.mxu0 %v1428
    %1582 = vmatpush2.bf16.msra.mxu0 %v1427
    %1583 = vmatprep.subr.bf16.mxu0 %v1426
    %1584 = vmatpush2.bf16.msra.mxu0 %v1425
    %1585 = vmatprep.subr.bf16.mxu0 %v1424
    %1586 = vmatpush2.bf16.msra.mxu0 %v1423
    %1587 = vmatprep.subr.bf16.mxu0 %v1422
    %1588 = vmatpush2.bf16.msra.mxu0 %v1421
    %1589 = vmatprep.subr.bf16.mxu0 %v1420
    %1590 = vmatpush2.bf16.msra.mxu0 %v1419
    %1591 = vmatprep.subr.bf16.mxu0 %v1418
    %1592 = vmatpush2.bf16.msra.mxu0 %v1417
    %1593 = vmatprep.mubr.bf16.mxu0 %v1015
    %1594 = vmatmul.mubr.bf16.gmra.mxu0 %v1005
    %v1595 = vpop.f32.mrf.mxu0
    %v1596 = vadd.f32 0.0, %v1595
    %v1597 = vpop.f32.mrf.mxu0
    %v1598 = vadd.f32 0.0, %v1597
    %v1599 = vpop.f32.mrf.mxu0
    %v1600 = vadd.f32 0.0, %v1599
    %v1601 = vpop.f32.mrf.mxu0
    %v1602 = vadd.f32 0.0, %v1601
    %1603 = vmatprep.mubr.bf16.mxu0 %v1023
    %1604 = vmatmul.mubr.bf16.gmra.mxu0 %v1006
    %v1605 = vpop.f32.mrf.mxu0
    %v1606 = vadd.f32 0.0, %v1605
    %v1607 = vpop.f32.mrf.mxu0
    %v1608 = vadd.f32 0.0, %v1607
    %v1609 = vpop.f32.mrf.mxu0
    %v1610 = vadd.f32 0.0, %v1609
    %v1611 = vpop.f32.mrf.mxu0
    %v1612 = vadd.f32 0.0, %v1611
    %1613 = vmatprep.mubr.bf16.mxu0 %v1018
    %1614 = vmatmul.mubr.bf16.gmra.mxu0 %v1007
    %v1615 = vpop.f32.mrf.mxu0
    %v1616 = vadd.f32 0.0, %v1615
    %v1617 = vpop.f32.mrf.mxu0
    %v1618 = vadd.f32 0.0, %v1617
    %v1619 = vpop.f32.mrf.mxu0
    %v1620 = vadd.f32 0.0, %v1619
    %v1621 = vpop.f32.mrf.mxu0
    %v1622 = vadd.f32 0.0, %v1621
    %1623 = vmatprep.mubr.bf16.mxu0 %v1027
    %1624 = vmatmul.mubr.bf16.gmra.mxu0 %v1008
    %v1625 = vpop.f32.mrf.mxu0
    %v1626 = vadd.f32 0.0, %v1625
    %v1627 = vpop.f32.mrf.mxu0
    %v1628 = vadd.f32 0.0, %v1627
    %v1629 = vpop.f32.mrf.mxu0
    %v1630 = vadd.f32 0.0, %v1629
    %v1631 = vpop.f32.mrf.mxu0
    %v1632 = vadd.f32 0.0, %v1631
    %1633 = vdwg.mxu0
    %1634 = vmatprep.subr.bf16.mxu0 %v1448
    %1635 = vmatpush1.bf16.msra.mxu0 %v1447
    %1636 = vmatprep.subr.bf16.mxu0 %v1446
    %1637 = vmatpush1.bf16.msra.mxu0 %v1445
    %1638 = vmatprep.subr.bf16.mxu0 %v1444
    %1639 = vmatpush1.bf16.msra.mxu0 %v1443
    %1640 = vmatprep.subr.bf16.mxu0 %v1442
    %1641 = vmatpush1.bf16.msra.mxu0 %v1441
    %1642 = vmatprep.subr.bf16.mxu0 %v1440
    %1643 = vmatpush1.bf16.msra.mxu0 %v1439
    %1644 = vmatprep.subr.bf16.mxu0 %v1438
    %1645 = vmatpush1.bf16.msra.mxu0 %v1437
    %1646 = vmatprep.subr.bf16.mxu0 %v1436
    %1647 = vmatpush1.bf16.msra.mxu0 %v1435
    %1648 = vmatprep.subr.bf16.mxu0 %v1434
    %1649 = vmatpush1.bf16.msra.mxu0 %v1433
    %1650 = vmatprep.subr.bf16.mxu0 %v1464
    %1651 = vmatpush2.bf16.msra.mxu0 %v1463
    %1652 = vmatprep.subr.bf16.mxu0 %v1462
    %1653 = vmatpush2.bf16.msra.mxu0 %v1461
    %1654 = vmatprep.subr.bf16.mxu0 %v1460
    %1655 = vmatpush2.bf16.msra.mxu0 %v1459
    %1656 = vmatprep.subr.bf16.mxu0 %v1458
    %1657 = vmatpush2.bf16.msra.mxu0 %v1457
    %1658 = vmatprep.subr.bf16.mxu0 %v1456
    %1659 = vmatpush2.bf16.msra.mxu0 %v1455
    %1660 = vmatprep.subr.bf16.mxu0 %v1454
    %1661 = vmatpush2.bf16.msra.mxu0 %v1453
    %1662 = vmatprep.subr.bf16.mxu0 %v1452
    %1663 = vmatpush2.bf16.msra.mxu0 %v1451
    %1664 = vmatprep.subr.bf16.mxu0 %v1450
    %1665 = vmatpush2.bf16.msra.mxu0 %v1449
    %1666 = vmatprep.mubr.bf16.mxu0 %v1048
    %1667 = vmatmul.mubr.bf16.gmra.mxu0 %v1031
    %v1668 = vpop.f32.mrf.mxu0
    %v1669 = vadd.f32 %v1596, %v1668
    %v1670 = vpop.f32.mrf.mxu0
    %v1671 = vadd.f32 %v1598, %v1670
    %v1672 = vpop.f32.mrf.mxu0
    %v1673 = vadd.f32 %v1600, %v1672
    %v1674 = vpop.f32.mrf.mxu0
    %v1675 = vadd.f32 %v1602, %v1674
    %1676 = vmatprep.mubr.bf16.mxu0 %v1057
    %1677 = vmatmul.mubr.bf16.gmra.mxu0 %v1039
    %v1678 = vpop.f32.mrf.mxu0
    %v1679 = vadd.f32 %v1606, %v1678
    %v1680 = vpop.f32.mrf.mxu0
    %v1681 = vadd.f32 %v1608, %v1680
    %v1682 = vpop.f32.mrf.mxu0
    %v1683 = vadd.f32 %v1610, %v1682
    %v1684 = vpop.f32.mrf.mxu0
    %v1685 = vadd.f32 %v1612, %v1684
    %1686 = vmatprep.mubr.bf16.mxu0 %v1051
    %1687 = vmatmul.mubr.bf16.gmra.mxu0 %v1034
    %v1688 = vpop.f32.mrf.mxu0
    %v1689 = vadd.f32 %v1616, %v1688
    %v1690 = vpop.f32.mrf.mxu0
    %v1691 = vadd.f32 %v1618, %v1690
    %v1692 = vpop.f32.mrf.mxu0
    %v1693 = vadd.f32 %v1620, %v1692
    %v1694 = vpop.f32.mrf.mxu0
    %v1695 = vadd.f32 %v1622, %v1694
    %1696 = vmatprep.mubr.bf16.mxu0 %v1061
    %1697 = vmatmul.mubr.bf16.gmra.mxu0 %v1043
    %v1698 = vpop.f32.mrf.mxu0
    %v1699 = vadd.f32 %v1626, %v1698
    %v1700 = vpop.f32.mrf.mxu0
    %v1701 = vadd.f32 %v1628, %v1700
    %v1702 = vpop.f32.mrf.mxu0
    %v1703 = vadd.f32 %v1630, %v1702
    %v1704 = vpop.f32.mrf.mxu0
    %v1705 = vadd.f32 %v1632, %v1704
    %1706 = vdwg.mxu0
    %1707 = vmatprep.subr.bf16.mxu0 %v1480
    %1708 = vmatpush1.bf16.msra.mxu0 %v1479
    %1709 = vmatprep.subr.bf16.mxu0 %v1478
    %1710 = vmatpush1.bf16.msra.mxu0 %v1477
    %1711 = vmatprep.subr.bf16.mxu0 %v1476
    %1712 = vmatpush1.bf16.msra.mxu0 %v1475
    %1713 = vmatprep.subr.bf16.mxu0 %v1474
    %1714 = vmatpush1.bf16.msra.mxu0 %v1473
    %1715 = vmatprep.subr.bf16.mxu0 %v1472
    %1716 = vmatpush1.bf16.msra.mxu0 %v1471
    %1717 = vmatprep.subr.bf16.mxu0 %v1470
    %1718 = vmatpush1.bf16.msra.mxu0 %v1469
    %1719 = vmatprep.subr.bf16.mxu0 %v1468
    %1720 = vmatpush1.bf16.msra.mxu0 %v1467
    %1721 = vmatprep.subr.bf16.mxu0 %v1466
    %1722 = vmatpush1.bf16.msra.mxu0 %v1465
    %1723 = vmatprep.subr.bf16.mxu0 0
    %1724 = vmatpush2.bf16.msra.mxu0 0
    %1725 = vmatprep.subr.bf16.mxu0 0
    %1726 = vmatpush2.bf16.msra.mxu0 0
    %1727 = vmatprep.subr.bf16.mxu0 0
    %1728 = vmatpush2.bf16.msra.mxu0 0
    %1729 = vmatprep.subr.bf16.mxu0 0
    %1730 = vmatpush2.bf16.msra.mxu0 0
    %1731 = vmatprep.subr.bf16.mxu0 0
    %1732 = vmatpush2.bf16.msra.mxu0 0
    %1733 = vmatprep.subr.bf16.mxu0 0
    %1734 = vmatpush2.bf16.msra.mxu0 0
    %1735 = vmatprep.subr.bf16.mxu0 0
    %1736 = vmatpush2.bf16.msra.mxu0 0
    %1737 = vmatprep.subr.bf16.mxu0 0
    %1738 = vmatpush2.bf16.msra.mxu0 0
    %1739 = vmatprep.mubr.bf16.mxu0 0
    %1740 = vmatmul.mubr.bf16.gmra.mxu0 %v1066
    %v1741 = vpop.f32.mrf.mxu0
    %v1742 = vadd.f32 %v1669, %v1741
    %v1743 = vpop.f32.mrf.mxu0
    %v1744 = vadd.f32 %v1671, %v1743
    %v1745 = vpop.f32.mrf.mxu0
    %v1746 = vadd.f32 %v1673, %v1745
    %v1747 = vpop.f32.mrf.mxu0
    %v1748 = vadd.f32 %v1675, %v1747
    %1749 = vmatprep.mubr.bf16.mxu0 0
    %1750 = vmatmul.mubr.bf16.gmra.mxu0 %v1075
    %v1751 = vpop.f32.mrf.mxu0
    %v1752 = vadd.f32 %v1679, %v1751
    %v1753 = vpop.f32.mrf.mxu0
    %v1754 = vadd.f32 %v1681, %v1753
    %v1755 = vpop.f32.mrf.mxu0
    %v1756 = vadd.f32 %v1683, %v1755
    %v1757 = vpop.f32.mrf.mxu0
    %v1758 = vadd.f32 %v1685, %v1757
    %1759 = vmatprep.mubr.bf16.mxu0 0
    %1760 = vmatmul.mubr.bf16.gmra.mxu0 %v1069
    %v1761 = vpop.f32.mrf.mxu0
    %v1762 = vadd.f32 %v1689, %v1761
    %v1763 = vpop.f32.mrf.mxu0
    %v1764 = vadd.f32 %v1691, %v1763
    %v1765 = vpop.f32.mrf.mxu0
    %v1766 = vadd.f32 %v1693, %v1765
    %v1767 = vpop.f32.mrf.mxu0
    %v1768 = vadd.f32 %v1695, %v1767
    %1769 = vmatprep.mubr.bf16.mxu0 0
    %1770 = vmatmul.mubr.bf16.gmra.mxu0 %v1079
    %v1771 = vpop.f32.mrf.mxu0
    %v1772 = vadd.f32 %v1699, %v1771
    %v1773 = vpop.f32.mrf.mxu0
    %v1774 = vadd.f32 %v1701, %v1773
    %v1775 = vpop.f32.mrf.mxu0
    %v1776 = vadd.f32 %v1703, %v1775
    %v1777 = vpop.f32.mrf.mxu0
    %v1778 = vadd.f32 %v1705, %v1777
    %1779 = vdwg.mxu0
    %v1780 = vmax.f32 %v1742, %v1744
    %v1781 = vmax.f32 %v1746, %v1748
    %v1782 = vmax.f32 %v1752, %v1754
    %v1783 = vmax.f32 %v1756, %v1758
    %v1784 = vmax.f32 %v1762, %v1764
    %v1785 = vmax.f32 %v1766, %v1768
    %v1786 = vmax.f32 %v1772, %v1774
    %v1787 = vmax.f32 %v1776, %v1778
    %v1796 = vrot.slane %v1780, 2
    %v1797 = vrot.slane %v1781, 2
    %v1798 = vsel %vm224, %v1796, %v1797
    %v1799 = vrot.slane %v1782, 2
    %v1800 = vsel %vm224, %v1797, %v1799
    %v1801 = vrot.slane %v1783, 2
    %v1802 = vsel %vm224, %v1799, %v1801
    %v1803 = vrot.slane %v1784, 2
    %v1804 = vrot.slane %v1785, 2
    %v1805 = vsel %vm224, %v1803, %v1804
    %v1806 = vrot.slane %v1786, 2
    %v1807 = vsel %vm224, %v1804, %v1806
    %v1808 = vrot.slane %v1787, 2
    %v1809 = vsel %vm224, %v1806, %v1808
    %v1820 = vsel %vm224, %v1801, %v1796
    %v1821 = vsel %vm224, %v1808, %v1803
    %v1822 = vmax.f32 %v1780, %v1798
    %v1823 = vmax.f32 %v1781, %v1800
    %v1824 = vmax.f32 %v1782, %v1802
    %v1825 = vmax.f32 %v1783, %v1820
    %v1826 = vmax.f32 %v1784, %v1805
    %v1827 = vmax.f32 %v1785, %v1807
    %v1828 = vmax.f32 %v1786, %v1809
    %v1829 = vmax.f32 %v1787, %v1821
    %v1830 = vld [vmem:[%s4] sm:$0x1]
    %v1832 = vlaneseq
    %v1833 = vshrl.u32 %v1832, 7
    %v1834 = vsub.s32 0, %v1833
    %v1835 = vrot.slane %v1830, %v1834
    %v1837 = vadd.f32 %v1822, %v1835
    %v1838 = vadd.f32 %v1823, %v1835
    %v1839 = vadd.f32 %v1824, %v1835
    %v1840 = vadd.f32 %v1825, %v1835
    %v1841 = vadd.f32 %v1826, %v1835
    %v1842 = vadd.f32 %v1827, %v1835
    %v1843 = vadd.f32 %v1828, %v1835
    %v1844 = vadd.f32 %v1829, %v1835
    %v1845 = vmax.f32 %v1837, 0.0
    %v1846 = vmax.f32 %v1838, 0.0
    %v1847 = vmax.f32 %v1839, 0.0
    %v1848 = vmax.f32 %v1840, 0.0
    %v1849 = vmax.f32 %v1841, 0.0
    %v1850 = vmax.f32 %v1842, 0.0
    %v1851 = vmax.f32 %v1843, 0.0
    %v1852 = vmax.f32 %v1844, 0.0
    %v1853 = vpack.c.bf16 %v1846, %v1845
    %v1854 = vpack.c.bf16 %v1848, %v1847
    %v1855 = vpack.c.bf16 %v1850, %v1849
    %v1856 = vpack.c.bf16 %v1852, %v1851
    %v1859 = vunpack.c.l.b16 %v1853
    %v1860 = vunpack.c.l.b16 %v1855
    %v1861 = vrot.slane %v1860, 7
    %vm1862 = vcmask 1041409
    %v1863 = vsel %vm1862, %v1861, %v1859
    %v1864 = vpack.c.b16 %v1863, %v1863
    %v1866 = vrot.slane %v1859, 4
    %v1867 = vrot.slane %v1860, 3
    %v1868 = vsel %vm1862, %v1867, %v1866
    %v1869 = vpack.c.b16 %v1868, %v1868
    %v1871 = vunpack.c.h.b16 %v1853
    %v1872 = vunpack.c.h.b16 %v1855
    %v1873 = vrot.slane %v1872, 7
    %v1874 = vsel %vm1862, %v1873, %v1871
    %v1875 = vpack.c.b16 %v1874, %v1874
    %v1877 = vrot.slane %v1871, 4
    %v1878 = vrot.slane %v1872, 3
    %v1879 = vsel %vm1862, %v1878, %v1877
    %v1880 = vpack.c.b16 %v1879, %v1879
    %v1884 = vunpack.c.l.b16 %v1854
    %v1885 = vunpack.c.l.b16 %v1856
    %v1886 = vrot.slane %v1885, 7
    %v1887 = vsel %vm1862, %v1886, %v1884
    %v1888 = vpack.c.b16 %v1887, %v1887
    %v1890 = vld [vmem:[%s5] sm:$0xf]
    %v1891 = vld [vmem:[%s5 + $0x4] sm:$0xf]
    %v1892 = vld [vmem:[%s5 + $0x8] sm:$0xf]
    %v1893 = vld [vmem:[%s5 + $0xc] sm:$0xf]
    %v1894 = vld [vmem:[%s5 + $0x10] sm:$0xf]
    %v1895 = vld [vmem:[%s5 + $0x14] sm:$0xf]
    %v1896 = vld [vmem:[%s5 + $0x18] sm:$0xf]
    %v1897 = vld [vmem:[%s5 + $0x1c] sm:$0xf]
    %v1898 = vld [vmem:[%s5 + $0x20] sm:$0xf]
    %v1899 = vld [vmem:[%s5 + $0x24] sm:$0xf]
    %v1900 = vld [vmem:[%s5 + $0x28] sm:$0xf]
    %v1901 = vld [vmem:[%s5 + $0x2c] sm:$0xf]
    %v1902 = vld [vmem:[%s5 + $0x30] sm:$0xf]
    %v1903 = vld [vmem:[%s5 + $0x34] sm:$0xf]
    %v1904 = vld [vmem:[%s5 + $0x38] sm:$0xf]
    %v1905 = vld [vmem:[%s5 + $0x3c] sm:$0xf]
    %v1906 = vld [vmem:[%s5 + $0x40] sm:$0xf]
    %v1907 = vld [vmem:[%s5 + $0x44] sm:$0xf]
    %v1908 = vld [vmem:[%s5 + $0x48] sm:$0xf]
    %v1909 = vld [vmem:[%s5 + $0x4c] sm:$0xf]
    %v1910 = vld [vmem:[%s5 + $0x50] sm:$0xf]
    %v1911 = vld [vmem:[%s5 + $0x54] sm:$0xf]
    %v1912 = vld [vmem:[%s5 + $0x58] sm:$0xf]
    %v1913 = vld [vmem:[%s5 + $0x5c] sm:$0xf]
    %v1914 = vld [vmem:[%s5 + $0x60] sm:$0xf]
    %v1915 = vld [vmem:[%s5 + $0x64] sm:$0xf]
    %v1916 = vld [vmem:[%s5 + $0x68] sm:$0xf]
    %v1917 = vld [vmem:[%s5 + $0x6c] sm:$0xf]
    %v1918 = vld [vmem:[%s5 + $0x70] sm:$0xf]
    %v1919 = vld [vmem:[%s5 + $0x74] sm:$0xf]
    %v1920 = vld [vmem:[%s5 + $0x78] sm:$0xf]
    %v1921 = vld [vmem:[%s5 + $0x7c] sm:$0xf]
    %v1922 = vld [vmem:[%s5 + $0x80] sm:$0xf]
    %v1923 = vld [vmem:[%s5 + $0x84] sm:$0xf]
    %v1924 = vld [vmem:[%s5 + $0x88] sm:$0xf]
    %v1925 = vld [vmem:[%s5 + $0x8c] sm:$0xf]
    %v1926 = vld [vmem:[%s5 + $0x90] sm:$0xf]
    %v1927 = vld [vmem:[%s5 + $0x94] sm:$0xf]
    %v1928 = vld [vmem:[%s5 + $0x98] sm:$0xf]
    %v1929 = vld [vmem:[%s5 + $0x9c] sm:$0xf]
    %v1930 = vld [vmem:[%s5 + $0xa0] sm:$0xf]
    %v1931 = vld [vmem:[%s5 + $0xa4] sm:$0xf]
    %v1932 = vld [vmem:[%s5 + $0xa8] sm:$0xf]
    %v1933 = vld [vmem:[%s5 + $0xac] sm:$0xf]
    %v1934 = vld [vmem:[%s5 + $0xb0] sm:$0xf]
    %v1935 = vld [vmem:[%s5 + $0xb4] sm:$0xf]
    %v1936 = vld [vmem:[%s5 + $0xb8] sm:$0xf]
    %v1937 = vld [vmem:[%s5 + $0xbc] sm:$0xf]
    %v1938 = vld [vmem:[%s5 + $0xc0] sm:$0xf]
    %v1939 = vld [vmem:[%s5 + $0xc4] sm:$0xf]
    %v1940 = vld [vmem:[%s5 + $0xc8] sm:$0xf]
    %v1941 = vld [vmem:[%s5 + $0xcc] sm:$0xf]
    %v1942 = vld [vmem:[%s5 + $0xd0] sm:$0xf]
    %v1943 = vld [vmem:[%s5 + $0xd4] sm:$0xf]
    %v1944 = vld [vmem:[%s5 + $0xd8] sm:$0xf]
    %v1945 = vld [vmem:[%s5 + $0xdc] sm:$0xf]
    %v1946 = vld [vmem:[%s5 + $0xe0] sm:$0xf]
    %v1947 = vld [vmem:[%s5 + $0xe4] sm:$0xf]
    %v1948 = vld [vmem:[%s5 + $0xe8] sm:$0xf]
    %v1949 = vld [vmem:[%s5 + $0xec] sm:$0xf]
    %v1950 = vld [vmem:[%s5 + $0xf0] sm:$0xf]
    %v1951 = vld [vmem:[%s5 + $0xf4] sm:$0xf]
    %v1952 = vld [vmem:[%s5 + $0xf8] sm:$0xf]
    %v1953 = vld [vmem:[%s5 + $0xfc] sm:$0xf]
    %v1954 = vld [vmem:[%s5 + $0x100] sm:$0xf]
    %v1955 = vld [vmem:[%s5 + $0x104] sm:$0xf]
    %v1956 = vld [vmem:[%s5 + $0x108] sm:$0xf]
    %v1957 = vld [vmem:[%s5 + $0x10c] sm:$0xf]
    %v1958 = vld [vmem:[%s5 + $0x110] sm:$0xf]
    %v1959 = vld [vmem:[%s5 + $0x114] sm:$0xf]
    %v1960 = vld [vmem:[%s5 + $0x118] sm:$0xf]
    %v1961 = vld [vmem:[%s5 + $0x11c] sm:$0xf]
    %v1962 = vld [vmem:[%s5 + $0x120] sm:$0xf]
    %v1963 = vld [vmem:[%s5 + $0x124] sm:$0xf]
    %v1964 = vld [vmem:[%s5 + $0x128] sm:$0xf]
    %v1965 = vld [vmem:[%s5 + $0x12c] sm:$0xf]
    %v1966 = vld [vmem:[%s5 + $0x130] sm:$0xf]
    %v1967 = vld [vmem:[%s5 + $0x134] sm:$0xf]
    %v1968 = vld [vmem:[%s5 + $0x138] sm:$0xf]
    %v1969 = vld [vmem:[%s5 + $0x13c] sm:$0xf]
    %v1970 = vld [vmem:[%s6] sm:$0x1]
    %v1972 = vlaneseq
    %v1973 = vshrl.u32 %v1972, 7
    %v1974 = vsub.s32 0, %v1973
    %v1975 = vrot.slane %v1970, %v1974
    %v2057 = vunpack.c.l.b16 %v1890
    %v2058 = vunpack.c.l.b16 %v1891
    %v2059 = vunpack.c.l.b16 %v1892
    %v2060 = vunpack.c.l.b16 %v1893
    %v2061 = vunpack.c.l.b16 %v1894
    %v2062 = vunpack.c.l.b16 %v1895
    %v2063 = vunpack.c.l.b16 %v1896
    %v2064 = vunpack.c.l.b16 %v1897
    %v2065 = vunpack.c.l.b16 %v1898
    %v2066 = vunpack.c.l.b16 %v1899
    %v2067 = vunpack.c.l.b16 %v1900
    %v2068 = vunpack.c.l.b16 %v1901
    %v2069 = vunpack.c.l.b16 %v1902
    %v2070 = vunpack.c.l.b16 %v1903
    %v2071 = vunpack.c.l.b16 %v1904
    %v2072 = vunpack.c.l.b16 %v1905
    %v2073 = vunpack.c.l.b16 %v1906
    %v2074 = vunpack.c.l.b16 %v1907
    %v2075 = vunpack.c.l.b16 %v1908
    %v2076 = vunpack.c.l.b16 %v1909
    %v2077 = vunpack.c.l.b16 %v1910
    %v2078 = vunpack.c.l.b16 %v1911
    %v2079 = vunpack.c.l.b16 %v1912
    %v2080 = vunpack.c.l.b16 %v1913
    %v2081 = vunpack.c.l.b16 %v1914
    %v2082 = vunpack.c.l.b16 %v1915
    %v2083 = vunpack.c.l.b16 %v1916
    %v2084 = vunpack.c.l.b16 %v1917
    %v2085 = vunpack.c.l.b16 %v1918
    %v2086 = vunpack.c.l.b16 %v1919
    %v2087 = vunpack.c.l.b16 %v1920
    %v2088 = vunpack.c.l.b16 %v1921
    %v2089 = vunpack.c.l.b16 %v1922
    %v2090 = vunpack.c.l.b16 %v1923
    %v2091 = vunpack.c.l.b16 %v1924
    %v2092 = vunpack.c.l.b16 %v1925
    %v2093 = vunpack.c.l.b16 %v1926
    %v2094 = vunpack.c.l.b16 %v1927
    %v2095 = vunpack.c.l.b16 %v1928
    %v2096 = vunpack.c.l.b16 %v1929
    %v2097 = vunpack.c.l.b16 %v1930
    %v2098 = vunpack.c.l.b16 %v1931
    %v2099 = vunpack.c.l.b16 %v1932
    %v2100 = vunpack.c.l.b16 %v1933
    %v2101 = vunpack.c.l.b16 %v1934
    %v2102 = vunpack.c.l.b16 %v1935
    %v2103 = vunpack.c.l.b16 %v1936
    %v2104 = vunpack.c.l.b16 %v1937
    %v2105 = vunpack.c.l.b16 %v1938
    %v2106 = vunpack.c.l.b16 %v1939
    %v2107 = vunpack.c.l.b16 %v1940
    %v2108 = vunpack.c.l.b16 %v1941
    %v2109 = vunpack.c.l.b16 %v1942
    %v2110 = vunpack.c.l.b16 %v1943
    %v2111 = vunpack.c.l.b16 %v1944
    %v2112 = vunpack.c.l.b16 %v1945
    %v2113 = vunpack.c.l.b16 %v1946
    %v2114 = vunpack.c.l.b16 %v1947
    %v2115 = vunpack.c.l.b16 %v1948
    %v2116 = vunpack.c.l.b16 %v1949
    %v2117 = vunpack.c.l.b16 %v1950
    %v2118 = vunpack.c.l.b16 %v1951
    %v2119 = vunpack.c.l.b16 %v1952
    %v2120 = vunpack.c.l.b16 %v1953
    %v2121 = vunpack.c.l.b16 %v1954
    %v2122 = vunpack.c.l.b16 %v1955
    %v2123 = vunpack.c.l.b16 %v1956
    %v2124 = vunpack.c.l.b16 %v1957
    %v2125 = vunpack.c.l.b16 %v1958
    %v2126 = vunpack.c.l.b16 %v1959
    %v2127 = vunpack.c.l.b16 %v1960
    %v2128 = vunpack.c.l.b16 %v1961
    %v2129 = vunpack.c.l.b16 %v1962
    %v2130 = vunpack.c.l.b16 %v1963
    %v2131 = vunpack.c.l.b16 %v1964
    %v2132 = vunpack.c.l.b16 %v1965
    %v2133 = vunpack.c.l.b16 %v1966
    %v2134 = vunpack.c.l.b16 %v1967
    %v2135 = vunpack.c.l.b16 %v1968
    %v2136 = vunpack.c.l.b16 %v1969
    %v2137 = vpack.c.b16 %v2058, %v2057
    %v2138 = vpack.c.b16 %v2060, %v2059
    %v2139 = vpack.c.b16 %v2062, %v2061
    %v2140 = vpack.c.b16 %v2064, %v2063
    %v2141 = vpack.c.b16 %v2066, %v2065
    %v2142 = vpack.c.b16 %v2068, %v2067
    %v2143 = vpack.c.b16 %v2070, %v2069
    %v2144 = vpack.c.b16 %v2072, %v2071
    %v2145 = vpack.c.b16 %v2074, %v2073
    %v2146 = vpack.c.b16 %v2076, %v2075
    %v2147 = vpack.c.b16 %v2078, %v2077
    %v2148 = vpack.c.b16 %v2080, %v2079
    %v2149 = vpack.c.b16 %v2082, %v2081
    %v2150 = vpack.c.b16 %v2084, %v2083
    %v2151 = vpack.c.b16 %v2086, %v2085
    %v2152 = vpack.c.b16 %v2088, %v2087
    %v2153 = vpack.c.b16 %v2090, %v2089
    %v2154 = vpack.c.b16 %v2092, %v2091
    %v2155 = vpack.c.b16 %v2094, %v2093
    %v2156 = vpack.c.b16 %v2096, %v2095
    %v2157 = vpack.c.b16 %v2098, %v2097
    %v2158 = vpack.c.b16 %v2100, %v2099
    %v2159 = vpack.c.b16 %v2102, %v2101
    %v2160 = vpack.c.b16 %v2104, %v2103
    %v2161 = vpack.c.b16 %v2106, %v2105
    %v2162 = vpack.c.b16 %v2108, %v2107
    %v2163 = vpack.c.b16 %v2110, %v2109
    %v2164 = vpack.c.b16 %v2112, %v2111
    %v2165 = vpack.c.b16 %v2114, %v2113
    %v2166 = vpack.c.b16 %v2116, %v2115
    %v2167 = vpack.c.b16 %v2118, %v2117
    %v2168 = vpack.c.b16 %v2120, %v2119
    %v2169 = vpack.c.b16 %v2122, %v2121
    %v2170 = vpack.c.b16 %v2124, %v2123
    %v2171 = vpack.c.b16 %v2126, %v2125
    %v2172 = vpack.c.b16 %v2128, %v2127
    %v2173 = vpack.c.b16 %v2130, %v2129
    %v2174 = vpack.c.b16 %v2132, %v2131
    %v2175 = vpack.c.b16 %v2134, %v2133
    %v2176 = vpack.c.b16 %v2136, %v2135
    %2217 = vmatprep.subr.bf16.mxu0 0
    %2218 = vmatpush1.bf16.msra.mxu0 %v2144
    %2219 = vmatprep.subr.bf16.mxu0 0
    %2220 = vmatpush1.bf16.msra.mxu0 %v2143
    %2221 = vmatprep.subr.bf16.mxu0 0
    %2222 = vmatpush1.bf16.msra.mxu0 %v2142
    %2223 = vmatprep.subr.bf16.mxu0 0
    %2224 = vmatpush1.bf16.msra.mxu0 %v2141
    %2225 = vmatprep.subr.bf16.mxu0 0
    %2226 = vmatpush1.bf16.msra.mxu0 %v2140
    %2227 = vmatprep.subr.bf16.mxu0 0
    %2228 = vmatpush1.bf16.msra.mxu0 %v2139
    %2229 = vmatprep.subr.bf16.mxu0 0
    %2230 = vmatpush1.bf16.msra.mxu0 %v2138
    %2231 = vmatprep.subr.bf16.mxu0 0
    %2232 = vmatpush1.bf16.msra.mxu0 %v2137
    %2233 = vmatprep.subr.bf16.mxu0 0
    %2234 = vmatpush2.bf16.msra.mxu0 %v2152
    %2235 = vmatprep.subr.bf16.mxu0 0
    %2236 = vmatpush2.bf16.msra.mxu0 %v2151
    %2237 = vmatprep.subr.bf16.mxu0 0
    %2238 = vmatpush2.bf16.msra.mxu0 %v2150
    %2239 = vmatprep.subr.bf16.mxu0 0
    %2240 = vmatpush2.bf16.msra.mxu0 %v2149
    %2241 = vmatprep.subr.bf16.mxu0 0
    %2242 = vmatpush2.bf16.msra.mxu0 %v2148
    %2243 = vmatprep.subr.bf16.mxu0 0
    %2244 = vmatpush2.bf16.msra.mxu0 %v2147
    %2245 = vmatprep.subr.bf16.mxu0 0
    %2246 = vmatpush2.bf16.msra.mxu0 %v2146
    %2247 = vmatprep.subr.bf16.mxu0 0
    %2248 = vmatpush2.bf16.msra.mxu0 %v2145
    %2249 = vmatprep.mubr.bf16.mxu0 %v1869
    %2250 = vmatmul.mubr.bf16.gmra.mxu0 %v1864
    %v2251 = vpop.f32.mrf.mxu0
    %v2252 = vadd.f32 %v1975, %v2251
    %v2253 = vpop.f32.mrf.mxu0
    %v2254 = vpop.f32.mrf.mxu0
    %v2255 = vpop.f32.mrf.mxu0
    %2256 = vdwg.mxu0
    %2257 = vmatprep.subr.bf16.mxu0 0
    %2258 = vmatpush1.bf16.msra.mxu0 %v2160
    %2259 = vmatprep.subr.bf16.mxu0 0
    %2260 = vmatpush1.bf16.msra.mxu0 %v2159
    %2261 = vmatprep.subr.bf16.mxu0 0
    %2262 = vmatpush1.bf16.msra.mxu0 %v2158
    %2263 = vmatprep.subr.bf16.mxu0 0
    %2264 = vmatpush1.bf16.msra.mxu0 %v2157
    %2265 = vmatprep.subr.bf16.mxu0 0
    %2266 = vmatpush1.bf16.msra.mxu0 %v2156
    %2267 = vmatprep.subr.bf16.mxu0 0
    %2268 = vmatpush1.bf16.msra.mxu0 %v2155
    %2269 = vmatprep.subr.bf16.mxu0 0
    %2270 = vmatpush1.bf16.msra.mxu0 %v2154
    %2271 = vmatprep.subr.bf16.mxu0 0
    %2272 = vmatpush1.bf16.msra.mxu0 %v2153
    %2273 = vmatprep.subr.bf16.mxu0 0
    %2274 = vmatpush2.bf16.msra.mxu0 %v2168
    %2275 = vmatprep.subr.bf16.mxu0 0
    %2276 = vmatpush2.bf16.msra.mxu0 %v2167
    %2277 = vmatprep.subr.bf16.mxu0 0
    %2278 = vmatpush2.bf16.msra.mxu0 %v2166
    %2279 = vmatprep.subr.bf16.mxu0 0
    %2280 = vmatpush2.bf16.msra.mxu0 %v2165
    %2281 = vmatprep.subr.bf16.mxu0 0
    %2282 = vmatpush2.bf16.msra.mxu0 %v2164
    %2283 = vmatprep.subr.bf16.mxu0 0
    %2284 = vmatpush2.bf16.msra.mxu0 %v2163
    %2285 = vmatprep.subr.bf16.mxu0 0
    %2286 = vmatpush2.bf16.msra.mxu0 %v2162
    %2287 = vmatprep.subr.bf16.mxu0 0
    %2288 = vmatpush2.bf16.msra.mxu0 %v2161
    %2289 = vmatprep.mubr.bf16.mxu0 %v1880
    %2290 = vmatmul.mubr.bf16.gmra.mxu0 %v1875
    %v2291 = vpop.f32.mrf.mxu0
    %v2292 = vadd.f32 %v2252, %v2291
    %v2293 = vpop.f32.mrf.mxu0
    %v2294 = vpop.f32.mrf.mxu0
    %v2295 = vpop.f32.mrf.mxu0
    %2296 = vdwg.mxu0
    %2297 = vmatprep.subr.bf16.mxu0 0
    %2298 = vmatpush1.bf16.msra.mxu0 %v2176
    %2299 = vmatprep.subr.bf16.mxu0 0
    %2300 = vmatpush1.bf16.msra.mxu0 %v2175
    %2301 = vmatprep.subr.bf16.mxu0 0
    %2302 = vmatpush1.bf16.msra.mxu0 %v2174
    %2303 = vmatprep.subr.bf16.mxu0 0
    %2304 = vmatpush1.bf16.msra.mxu0 %v2173
    %2305 = vmatprep.subr.bf16.mxu0 0
    %2306 = vmatpush1.bf16.msra.mxu0 %v2172
    %2307 = vmatprep.subr.bf16.mxu0 0
    %2308 = vmatpush1.bf16.msra.mxu0 %v2171
    %2309 = vmatprep.subr.bf16.mxu0 0
    %2310 = vmatpush1.bf16.msra.mxu0 %v2170
    %2311 = vmatprep.subr.bf16.mxu0 0
    %2312 = vmatpush1.bf16.msra.mxu0 %v2169
    %2313 = vmatprep.subr.bf16.mxu0 0
    %2314 = vmatpush2.bf16.msra.mxu0 0
    %2315 = vmatprep.subr.bf16.mxu0 0
    %2316 = vmatpush2.bf16.msra.mxu0 0
    %2317 = vmatprep.subr.bf16.mxu0 0
    %2318 = vmatpush2.bf16.msra.mxu0 0
    %2319 = vmatprep.subr.bf16.mxu0 0
    %2320 = vmatpush2.bf16.msra.mxu0 0
    %2321 = vmatprep.subr.bf16.mxu0 0
    %2322 = vmatpush2.bf16.msra.mxu0 0
    %2323 = vmatprep.subr.bf16.mxu0 0
    %2324 = vmatpush2.bf16.msra.mxu0 0
    %2325 = vmatprep.subr.bf16.mxu0 0
    %2326 = vmatpush2.bf16.msra.mxu0 0
    %2327 = vmatprep.subr.bf16.mxu0 0
    %2328 = vmatpush2.bf16.msra.mxu0 0
    %2329 = vmatprep.mubr.bf16.mxu0 0
    %2330 = vmatmul.mubr.bf16.gmra.mxu0 %v1888
    %v2331 = vpop.f32.mrf.mxu0
    %v2332 = vadd.f32 %v2292, %v2331
    %v2333 = vpop.f32.mrf.mxu0
    %v2334 = vpop.f32.mrf.mxu0
    %v2335 = vpop.f32.mrf.mxu0
    %2336 = vdwg.mxu0
    %v2337 = vmax.f32 %v2332, 0.0
    %v2338 = vpack.c.bf16 %v2337, %v2337
    %v2339 = vld [vmem:[%s7] sm:$0xf]
    %v2340 = vld [vmem:[%s7 + $0x4] sm:$0xf]
    %v2341 = vld [vmem:[%s7 + $0x8] sm:$0xf]
    %v2342 = vld [vmem:[%s7 + $0xc] sm:$0xf]
    %v2343 = vld [vmem:[%s7 + $0x10] sm:$0xf]
    %v2344 = vld [vmem:[%s7 + $0x14] sm:$0xf]
    %v2345 = vld [vmem:[%s7 + $0x18] sm:$0xf]
    %v2346 = vld [vmem:[%s7 + $0x1c] sm:$0xf]
    %v2347 = vld [vmem:[%s7 + $0x20] sm:$0xf]
    %v2348 = vld [vmem:[%s7 + $0x24] sm:$0xf]
    %v2349 = vld [vmem:[%s7 + $0x28] sm:$0xf]
    %v2350 = vld [vmem:[%s7 + $0x2c] sm:$0xf]
    %v2351 = vld [vmem:[%s7 + $0x30] sm:$0xf]
    %v2352 = vld [vmem:[%s7 + $0x34] sm:$0xf]
    %v2353 = vld [vmem:[%s7 + $0x38] sm:$0xf]
    %v2354 = vld [vmem:[%s7 + $0x3c] sm:$0xf]
    %v2355 = vld [vmem:[%s8] sm:$0x1]
    %v2357 = vlaneseq
    %v2358 = vshrl.u32 %v2357, 7
    %v2359 = vsub.s32 0, %v2358
    %v2360 = vrot.slane %v2355, %v2359
    %v2378 = vunpack.c.l.b16 %v2339
    %v2379 = vunpack.c.l.b16 %v2340
    %v2380 = vunpack.c.l.b16 %v2341
    %v2381 = vunpack.c.l.b16 %v2342
    %v2382 = vunpack.c.l.b16 %v2343
    %v2383 = vunpack.c.l.b16 %v2344
    %v2384 = vunpack.c.l.b16 %v2345
    %v2385 = vunpack.c.l.b16 %v2346
    %v2386 = vunpack.c.l.b16 %v2347
    %v2387 = vunpack.c.l.b16 %v2348
    %v2388 = vunpack.c.l.b16 %v2349
    %v2389 = vunpack.c.l.b16 %v2350
    %v2390 = vunpack.c.l.b16 %v2351
    %v2391 = vunpack.c.l.b16 %v2352
    %v2392 = vunpack.c.l.b16 %v2353
    %v2393 = vunpack.c.l.b16 %v2354
    %v2394 = vpack.c.b16 %v2379, %v2378
    %v2395 = vpack.c.b16 %v2381, %v2380
    %v2396 = vpack.c.b16 %v2383, %v2382
    %v2397 = vpack.c.b16 %v2385, %v2384
    %v2398 = vpack.c.b16 %v2387, %v2386
    %v2399 = vpack.c.b16 %v2389, %v2388
    %v2400 = vpack.c.b16 %v2391, %v2390
    %v2401 = vpack.c.b16 %v2393, %v2392
    %2410 = vmatprep.subr.bf16.mxu0 0
    %2411 = vmatpush1.bf16.msra.mxu0 %v2401
    %2412 = vmatprep.subr.bf16.mxu0 0
    %2413 = vmatpush1.bf16.msra.mxu0 %v2400
    %2414 = vmatprep.subr.bf16.mxu0 0
    %2415 = vmatpush1.bf16.msra.mxu0 %v2399
    %2416 = vmatprep.subr.bf16.mxu0 0
    %2417 = vmatpush1.bf16.msra.mxu0 %v2398
    %2418 = vmatprep.subr.bf16.mxu0 0
    %2419 = vmatpush1.bf16.msra.mxu0 %v2397
    %2420 = vmatprep.subr.bf16.mxu0 0
    %2421 = vmatpush1.bf16.msra.mxu0 %v2396
    %2422 = vmatprep.subr.bf16.mxu0 0
    %2423 = vmatpush1.bf16.msra.mxu0 %v2395
    %2424 = vmatprep.subr.bf16.mxu0 0
    %2425 = vmatpush1.bf16.msra.mxu0 %v2394
    %2426 = vmatprep.subr.bf16.mxu0 0
    %2427 = vmatpush2.bf16.msra.mxu0 0
    %2428 = vmatprep.subr.bf16.mxu0 0
    %2429 = vmatpush2.bf16.msra.mxu0 0
    %2430 = vmatprep.subr.bf16.mxu0 0
    %2431 = vmatpush2.bf16.msra.mxu0 0
    %2432 = vmatprep.subr.bf16.mxu0 0
    %2433 = vmatpush2.bf16.msra.mxu0 0
    %2434 = vmatprep.subr.bf16.mxu0 0
    %2435 = vmatpush2.bf16.msra.mxu0 0
    %2436 = vmatprep.subr.bf16.mxu0 0
    %2437 = vmatpush2.bf16.msra.mxu0 0
    %2438 = vmatprep.subr.bf16.mxu0 0
    %2439 = vmatpush2.bf16.msra.mxu0 0
    %2440 = vmatprep.subr.bf16.mxu0 0
    %2441 = vmatpush2.bf16.msra.mxu0 0
    %2442 = vmatprep.mubr.bf16.mxu0 0
    %2443 = vmatmul.mubr.bf16.gmra.mxu0 %v2338
    %v2444 = vpop.f32.mrf.mxu0
    %v2445 = vadd.f32 %v2360, %v2444
    %v2446 = vpop.f32.mrf.mxu0
    %v2447 = vpop.f32.mrf.mxu0
    %v2448 = vpop.f32.mrf.mxu0
    %2449 = vdwg.mxu0
    %v2450 = vmax.f32 %v2445, 0.0
    %v2451 = vpack.c.bf16 %v2450, %v2450
    %v2452 = vld [vmem:[%s9] sm:$0xf]
    %v2453 = vld [vmem:[%s9 + $0x4] sm:$0xf]
    %v2454 = vld [vmem:[%s9 + $0x8] sm:$0xf]
    %v2455 = vld [vmem:[%s9 + $0xc] sm:$0xf]
    %v2456 = vld [vmem:[%s9 + $0x10] sm:$0xf]
    %v2457 = vld [vmem:[%s9 + $0x14] sm:$0xf]
    %v2458 = vld [vmem:[%s9 + $0x18] sm:$0xf]
    %v2459 = vld [vmem:[%s9 + $0x1c] sm:$0xf]
    %v2460 = vld [vmem:[%s9 + $0x20] sm:$0xf]
    %v2461 = vld [vmem:[%s9 + $0x24] sm:$0xf]
    %v2462 = vld [vmem:[%s9 + $0x28] sm:$0xf]
    %v2463 = vld [vmem:[%s9 + $0x2c] sm:$0xf]
    %v2464 = vld [vmem:[%s9 + $0x30] sm:$0xf]
    %v2465 = vld [vmem:[%s9 + $0x34] sm:$0xf]
    %v2466 = vld [vmem:[%s9 + $0x38] sm:$0xf]
    %v2467 = vld [vmem:[%s9 + $0x3c] sm:$0xf]
    %v2468 = vld [vmem:[%s10] sm:$0x1]
    %v2470 = vlaneseq
    %v2471 = vshrl.u32 %v2470, 7
    %v2472 = vsub.s32 0, %v2471
    %v2473 = vrot.slane %v2468, %v2472
    %v2491 = vunpack.c.l.b16 %v2452
    %v2492 = vunpack.c.l.b16 %v2453
    %v2493 = vunpack.c.l.b16 %v2454
    %v2494 = vunpack.c.l.b16 %v2455
    %v2495 = vunpack.c.l.b16 %v2456
    %v2496 = vunpack.c.l.b16 %v2457
    %v2497 = vunpack.c.l.b16 %v2458
    %v2498 = vunpack.c.l.b16 %v2459
    %v2499 = vunpack.c.l.b16 %v2460
    %v2500 = vunpack.c.l.b16 %v2461
    %v2501 = vunpack.c.l.b16 %v2462
    %v2502 = vunpack.c.l.b16 %v2463
    %v2503 = vunpack.c.l.b16 %v2464
    %v2504 = vunpack.c.l.b16 %v2465
    %v2505 = vunpack.c.l.b16 %v2466
    %v2506 = vunpack.c.l.b16 %v2467
    %v2507 = vpack.c.b16 %v2492, %v2491
    %v2508 = vpack.c.b16 %v2494, %v2493
    %v2509 = vpack.c.b16 %v2496, %v2495
    %v2510 = vpack.c.b16 %v2498, %v2497
    %v2511 = vpack.c.b16 %v2500, %v2499
    %v2512 = vpack.c.b16 %v2502, %v2501
    %v2513 = vpack.c.b16 %v2504, %v2503
    %v2514 = vpack.c.b16 %v2506, %v2505
    %2523 = vmatprep.subr.bf16.mxu0 0
    %2524 = vmatpush1.bf16.msra.mxu0 %v2514
    %2525 = vmatprep.subr.bf16.mxu0 0
    %2526 = vmatpush1.bf16.msra.mxu0 %v2513
    %2527 = vmatprep.subr.bf16.mxu0 0
    %2528 = vmatpush1.bf16.msra.mxu0 %v2512
    %2529 = vmatprep.subr.bf16.mxu0 0
    %2530 = vmatpush1.bf16.msra.mxu0 %v2511
    %2531 = vmatprep.subr.bf16.mxu0 0
    %2532 = vmatpush1.bf16.msra.mxu0 %v2510
    %2533 = vmatprep.subr.bf16.mxu0 0
    %2534 = vmatpush1.bf16.msra.mxu0 %v2509
    %2535 = vmatprep.subr.bf16.mxu0 0
    %2536 = vmatpush1.bf16.msra.mxu0 %v2508
    %2537 = vmatprep.subr.bf16.mxu0 0
    %2538 = vmatpush1.bf16.msra.mxu0 %v2507
    %2539 = vmatprep.subr.bf16.mxu0 0
    %2540 = vmatpush2.bf16.msra.mxu0 0
    %2541 = vmatprep.subr.bf16.mxu0 0
    %2542 = vmatpush2.bf16.msra.mxu0 0
    %2543 = vmatprep.subr.bf16.mxu0 0
    %2544 = vmatpush2.bf16.msra.mxu0 0
    %2545 = vmatprep.subr.bf16.mxu0 0
    %2546 = vmatpush2.bf16.msra.mxu0 0
    %2547 = vmatprep.subr.bf16.mxu0 0
    %2548 = vmatpush2.bf16.msra.mxu0 0
    %2549 = vmatprep.subr.bf16.mxu0 0
    %2550 = vmatpush2.bf16.msra.mxu0 0
    %2551 = vmatprep.subr.bf16.mxu0 0
    %2552 = vmatpush2.bf16.msra.mxu0 0
    %2553 = vmatprep.subr.bf16.mxu0 0
    %2554 = vmatpush2.bf16.msra.mxu0 0
    %2555 = vmatprep.mubr.bf16.mxu0 0
    %2556 = vmatmul.mubr.bf16.gmra.mxu0 %v2451
    %v2557 = vpop.f32.mrf.mxu0
    %v2558 = vadd.f32 %v2473, %v2557
    %v2559 = vpop.f32.mrf.mxu0
    %v2560 = vpop.f32.mrf.mxu0
    %v2561 = vpop.f32.mrf.mxu0
    %2562 = vdwg.mxu0
    %2563 = vst [vmem:[#allocation2] sm:$0x3] %v2558
    // Predicated region
    $region46: #{net_forward.1} parent=1 // pred_check
      _
    $region47: #{net_forward.1} parent=1 // pred_check_branch
      %2565 = sbr.rel (0) target = $region49
    $region48: #{net_forward.1} parent=1 // pred_region
      %s2567 = ssub.s32 32, 32
      %2568 = vsyncadd [#allocation3], %s2567
      %s2570 = sshll.u32 [#allocation2], 4
      %s2571 = int_to_ptr.vmem [resolvable:$true] %s2570
      %2573 = dma.vmem_to_hbm [thread:$0]  %s2571, 32, %s11, [#allocation3]
    $region49: #{net_forward.1} parent=1 // pred_fallthru
      _
    // Predicated region
    $region50: #{net_forward.1} parent=1 // pred_check
      _
    $region51: #{net_forward.1} parent=1 // pred_check_branch
      %2575 = sbr.rel (0) target = $region53
    $region52: #{net_forward.1} parent=1 // pred_region
      %2576 = dma.done [#allocation3], 32
    $region53: #{net_forward.1} parent=1 // pred_fallthru
      _
    %2577 = vsyncpa [#allocation3], 1

</llo_original>
